<compile_context>
chip_gen: v7x
topology: tpu7x:2x2x1
jax: 0.10.0
libtpu: 0.0.40
codegen_flags: <defaults>
</compile_context>

<pallas_src>
import functools

import jax
import jax.numpy as jnp
from jax.experimental import pallas as pl
from jax.experimental.pallas import tpu as pltpu


def _round_up(x, m):
    return ((x + m - 1) // m) * m


def _cross_attn_kernel(res_ref, q_ref, k_ref, v_ref,
                       wq_ref, bq_ref, wk_ref, bk_ref, wv_ref, bv_ref,
                       wo_ref, bo_ref, g_ref, beta_ref, o_ref,
                       *, nhead, eps, mm_dtype):
    """One (batch, query-tile) step: QKV projection, per-head attention,
    output projection, residual add and LayerNorm — all in VMEM."""
    f32 = jnp.float32

    def mm(a, b):  # MXU matmul, f32 accumulation
        return jax.lax.dot_general(
            a.astype(mm_dtype), b.astype(mm_dtype),
            dimension_numbers=(((1,), (0,)), ((), ())),
            preferred_element_type=f32)

    xq = q_ref[...]                     # (TQ, E)
    xk = k_ref[...]                     # (S,  E)
    xv = v_ref[...]                     # (S,  E)

    d_model = xq.shape[-1]
    d_head = d_model // nhead
    scale = 1.0 / (float(d_head) ** 0.5)

    q = mm(xq, wq_ref[...]) + bq_ref[...]          # (TQ, E) f32
    q = q * scale
    k = mm(xk, wk_ref[...]) + bk_ref[...]          # (S, E)  f32
    v = mm(xv, wv_ref[...]) + bv_ref[...]          # (S, E)  f32

    # Per-head softmax attention (static Python loop; nhead is small).
    ctx_heads = []
    for h in range(nhead):
        lo = h * d_head
        qh = q[:, lo:lo + d_head]                  # (TQ, Dh)
        kh = k[:, lo:lo + d_head]                  # (S,  Dh)
        vh = v[:, lo:lo + d_head]                  # (S,  Dh)
        # scores = qh @ kh^T  -> (TQ, S)
        s = jax.lax.dot_general(
            qh.astype(mm_dtype), kh.astype(mm_dtype),
            dimension_numbers=(((1,), (1,)), ((), ())),
            preferred_element_type=f32)
        # TODO(synk): additive memory_mask / key_padding_mask would be applied
        # to `s` here; the reference config passes None for both.
        s = s - jnp.max(s, axis=-1, keepdims=True)
        p = jnp.exp(s)
        p = p / jnp.sum(p, axis=-1, keepdims=True)
        ctx_heads.append(
            jnp.dot(p.astype(mm_dtype), vh.astype(mm_dtype),
                    preferred_element_type=f32))   # (TQ, Dh)
    ctx = ctx_heads[0] if nhead == 1 else jnp.concatenate(ctx_heads, axis=-1)

    attn_out = mm(ctx, wo_ref[...]) + bo_ref[...]  # (TQ, E) f32

    # residual + LayerNorm (biased variance; matches torch.nn.LayerNorm)
    r = res_ref[...].astype(f32) + attn_out
    mean = jnp.mean(r, axis=-1, keepdims=True)
    c = r - mean
    var = jnp.mean(c * c, axis=-1, keepdims=True)
    inv = jax.lax.rsqrt(var + eps)
    o_ref[...] = (c * inv * g_ref[...] + beta_ref[...]).astype(o_ref.dtype)


def cross_attention_layer_pallas(tgt, memory, wq, bq, wk, bk, wv, bv, wo, bo,
                                 gamma, beta, *, nhead, query_pos=None,
                                 pos=None, eps=1e-5, q_tile=128,
                                 matmul_dtype=jnp.float32):
    """Fused CrossAttentionLayer.forward_post.

    tgt: (L, B, E), memory: (S, B, E). Weights are (in, out); biases/gamma/beta (E,).
    matmul_dtype=jnp.bfloat16 uses bf16 MXU inputs with f32 accumulation.
    Returns (L, B, E) in tgt.dtype.
    """
    L, B, E = tgt.shape
    S = memory.shape[0]
    assert E % nhead == 0, "d_model must be divisible by nhead"
    assert memory.shape[1:] == (B, E)

    q_in = tgt if query_pos is None else tgt + query_pos
    k_in = memory if pos is None else memory + pos

    # Batch-major so batch is a squeezed grid dim and d_model maps to lanes.
    res_b = jnp.transpose(tgt, (1, 0, 2))       # (B, L, E)
    q_b = jnp.transpose(q_in, (1, 0, 2))        # (B, L, E)
    k_b = jnp.transpose(k_in, (1, 0, 2))        # (B, S, E)
    v_b = jnp.transpose(memory, (1, 0, 2))      # (B, S, E)

    # Query-row tile: as large as possible up to q_tile; pad L instead of
    # falling back to a whole-array block.
    tq = min(q_tile, _round_up(L, 8))
    l_pad = _round_up(L, tq)
    if l_pad != L:
        pad = ((0, 0), (0, l_pad - L), (0, 0))
        res_b = jnp.pad(res_b, pad)
        q_b = jnp.pad(q_b, pad)

    mm_dt = jnp.dtype(matmul_dtype)
    if mm_dt != jnp.dtype(jnp.float32):
        # Halve activation/weight HBM->VMEM traffic; accumulation stays f32.
        q_b, k_b, v_b = (t.astype(mm_dt) for t in (q_b, k_b, v_b))
        wq_c, wk_c, wv_c, wo_c = (w.astype(mm_dt) for w in (wq, wk, wv, wo))
    else:
        wq_c, wk_c, wv_c, wo_c = wq, wk, wv, wo

    bq2, bk2, bv2, bo2 = (x.reshape(1, E) for x in (bq, bk, bv, bo))
    g2, beta2 = gamma.reshape(1, E), beta.reshape(1, E)

    grid = (B, l_pad // tq)

    row_spec = pl.BlockSpec((None, tq, E), lambda b, qi: (b, qi, 0))
    mem_spec = pl.BlockSpec((None, S, E), lambda b, qi: (b, 0, 0))
    w_spec = pl.BlockSpec((E, E), lambda b, qi: (0, 0))
    vec_spec = pl.BlockSpec((1, E), lambda b, qi: (0, 0))

    flops = (2 * B * E * E * (2 * l_pad + 2 * S)   # q, k, v, out projections
             + 4 * B * l_pad * S * E)              # QK^T and PV
    cost = pl.CostEstimate(
        flops=flops,
        transcendentals=B * nhead * l_pad * S,
        bytes_accessed=4 * (3 * B * l_pad * E + 2 * B * S * E
                            + 4 * E * E + 6 * E),
    )

    kernel = functools.partial(_cross_attn_kernel, nhead=nhead, eps=eps,
                               mm_dtype=mm_dt)

    out = pl.pallas_call(
        kernel,
        out_shape=jax.ShapeDtypeStruct((B, l_pad, E), tgt.dtype),
        grid_spec=pltpu.PrefetchScalarGridSpec(
            num_scalar_prefetch=0,
            grid=grid,
            in_specs=[row_spec, row_spec, mem_spec, mem_spec,
                      w_spec, vec_spec, w_spec, vec_spec,
                      w_spec, vec_spec, w_spec, vec_spec,
                      vec_spec, vec_spec],
            out_specs=row_spec,
        ),
        compiler_params=pltpu.CompilerParams(
            dimension_semantics=("parallel", "parallel")),
        cost_estimate=cost,
    )(res_b, q_b, k_b, v_b, wq_c, bq2, wk_c, bk2, wv_c, bv2, wo_c, bo2,
      g2, beta2)

    out = out[:, :L, :]
    return jnp.transpose(out, (1, 0, 2))


# ---------------- plain-JAX reference & init helpers ----------------

def xavier_uniform(key, shape, dtype=jnp.float32):
    fan_in, fan_out = shape[0], shape[1]
    limit = (6.0 / (fan_in + fan_out)) ** 0.5
    return jax.random.uniform(key, shape, dtype, minval=-limit, maxval=limit)


def cross_attention_ref(tgt, memory, wq, bq, wk, bk, wv, bv, wo, bo,
                        gamma, beta, *, nhead, query_pos=None, pos=None,
                        eps=1e-5):
    L, B, E = tgt.shape
    S = memory.shape[0]
    dh = E // nhead
    q_in = tgt if query_pos is None else tgt + query_pos
    k_in = memory if pos is None else memory + pos
    q = q_in @ wq + bq
    k = k_in @ wk + bk
    v = memory @ wv + bv
    qh = q.reshape(L, B, nhead, dh)
    kh = k.reshape(S, B, nhead, dh)
    vh = v.reshape(S, B, nhead, dh)
    s = jnp.einsum('lbhd,sbhd->bhls', qh, kh) / (dh ** 0.5)
    p = jax.nn.softmax(s, axis=-1)
    ctx = jnp.einsum('bhls,sbhd->lbhd', p, vh).reshape(L, B, E)
    attn = ctx @ wo + bo
    r = tgt + attn
    mean = r.mean(-1, keepdims=True)
    var = ((r - mean) ** 2).mean(-1, keepdims=True)
    return (r - mean) / jnp.sqrt(var + eps) * gamma + beta


if __name__ == "__main__":
    key = jax.random.PRNGKey(0)
    ks = jax.random.split(key, 14)

    # small Mask2Former-like shapes: queries L=8, memory tokens S=32,
    # batch B=2, d_model E=32, nhead=4 (head_dim=8)
    L, S, B, E, H = 8, 32, 2, 32, 4

    tgt = jax.random.normal(ks[0], (L, B, E), jnp.float32)
    memory = jax.random.normal(ks[1], (S, B, E), jnp.float32)
    query_pos = 0.1 * jax.random.normal(ks[2], (L, B, E), jnp.float32)
    pos = 0.1 * jax.random.normal(ks[3], (S, B, E), jnp.float32)

    # parameters (xavier_uniform for matrices, as in the module's reset)
    wq = xavier_uniform(ks[4], (E, E))
    wk = xavier_uniform(ks[5], (E, E))
    wv = xavier_uniform(ks[6], (E, E))
    wo = xavier_uniform(ks[7], (E, E))
    bq = 0.01 * jax.random.normal(ks[8], (E,), jnp.float32)
    bk = 0.01 * jax.random.normal(ks[9], (E,), jnp.float32)
    bv = 0.01 * jax.random.normal(ks[10], (E,), jnp.float32)
    bo = 0.01 * jax.random.normal(ks[11], (E,), jnp.float32)
    gamma = 1.0 + 0.1 * jax.random.normal(ks[12], (E,), jnp.float32)
    beta = 0.1 * jax.random.normal(ks[13], (E,), jnp.float32)

    ref = cross_attention_ref(tgt, memory, wq, bq, wk, bk, wv, bv, wo, bo,
                              gamma, beta, nhead=H,
                              query_pos=query_pos, pos=pos)

    # f32 path (exact semantics)
    out = cross_attention_layer_pallas(tgt, memory, wq, bq, wk, bk, wv, bv,
                                       wo, bo, gamma, beta, nhead=H,
                                       query_pos=query_pos, pos=pos)
    out = jax.block_until_ready(out)
    assert out.shape == tgt.shape
    assert jnp.allclose(out, ref, atol=1e-3, rtol=1e-3), "f32 mismatch vs reference"

    # bf16 MXU path (f32 accumulation / f32 LayerNorm), relaxed tolerance
    out_bf16 = cross_attention_layer_pallas(tgt, memory, wq, bq, wk, bk, wv,
                                            bv, wo, bo, gamma, beta, nhead=H,
                                            query_pos=query_pos, pos=pos,
                                            matmul_dtype=jnp.bfloat16)
    out_bf16 = jax.block_until_ready(out_bf16)
    assert jnp.allclose(out_bf16, ref, atol=7e-2, rtol=5e-2), "bf16 mismatch vs reference"

    print("KERNEL_OK")
</pallas_src>

<mosaic_0001>
module attributes {stable_mosaic.version = 11 : i64} {
  func.func @_cross_attn_kernel(%arg0: i32, %arg1: i32, %arg2: memref<1x8x32xf32, #tpu.memory_space<vmem>>, %arg3: memref<1x8x32xf32, #tpu.memory_space<vmem>>, %arg4: memref<1x32x32xf32, #tpu.memory_space<vmem>>, %arg5: memref<1x32x32xf32, #tpu.memory_space<vmem>>, %arg6: memref<32x32xf32, #tpu.memory_space<vmem>>, %arg7: memref<1x32xf32, #tpu.memory_space<vmem>>, %arg8: memref<32x32xf32, #tpu.memory_space<vmem>>, %arg9: memref<1x32xf32, #tpu.memory_space<vmem>>, %arg10: memref<32x32xf32, #tpu.memory_space<vmem>>, %arg11: memref<1x32xf32, #tpu.memory_space<vmem>>, %arg12: memref<32x32xf32, #tpu.memory_space<vmem>>, %arg13: memref<1x32xf32, #tpu.memory_space<vmem>>, %arg14: memref<1x32xf32, #tpu.memory_space<vmem>>, %arg15: memref<1x32xf32, #tpu.memory_space<vmem>>, %arg16: memref<1x8x32xf32, #tpu.memory_space<vmem>>) attributes {dimension_semantics = [#tpu.dimension_semantics<parallel>, #tpu.dimension_semantics<parallel>], iteration_bounds = array<i64: 2, 1>, scalar_prefetch = 0 : i64, scratch_operands = 0 : i64, tpu.core_type = #tpu.core_type<tc>, window_params = [{transform_indices = @transform_0, window_bounds = array<i64: 1, 8, 32>}, {transform_indices = @transform_1, window_bounds = array<i64: 1, 8, 32>}, {transform_indices = @transform_2, window_bounds = array<i64: 1, 32, 32>}, {transform_indices = @transform_3, window_bounds = array<i64: 1, 32, 32>}, {pipeline_mode = #tpu.pipeline_mode<synchronous>, transform_indices = @transform_4, window_bounds = array<i64: 32, 32>}, {pipeline_mode = #tpu.pipeline_mode<synchronous>, transform_indices = @transform_5, window_bounds = array<i64: 1, 32>}, {pipeline_mode = #tpu.pipeline_mode<synchronous>, transform_indices = @transform_6, window_bounds = array<i64: 32, 32>}, {pipeline_mode = #tpu.pipeline_mode<synchronous>, transform_indices = @transform_7, window_bounds = array<i64: 1, 32>}, {pipeline_mode = #tpu.pipeline_mode<synchronous>, transform_indices = @transform_8, window_bounds = array<i64: 32, 32>}, {pipeline_mode = #tpu.pipeline_mode<synchronous>, transform_indices = @transform_9, window_bounds = array<i64: 1, 32>}, {pipeline_mode = #tpu.pipeline_mode<synchronous>, transform_indices = @transform_10, window_bounds = array<i64: 32, 32>}, {pipeline_mode = #tpu.pipeline_mode<synchronous>, transform_indices = @transform_11, window_bounds = array<i64: 1, 32>}, {pipeline_mode = #tpu.pipeline_mode<synchronous>, transform_indices = @transform_12, window_bounds = array<i64: 1, 32>}, {pipeline_mode = #tpu.pipeline_mode<synchronous>, transform_indices = @transform_13, window_bounds = array<i64: 1, 32>}, {transform_indices = @transform_14, window_bounds = array<i64: 1, 8, 32>}]} {
    %c0 = arith.constant 0 : index
    %c0_0 = arith.constant 0 : index
    %c0_1 = arith.constant 0 : index
    %0 = vector.load %arg3[%c0, %c0_0, %c0_1] : memref<1x8x32xf32, #tpu.memory_space<vmem>>, vector<1x8x32xf32>
    %1 = vector.shape_cast %0 : vector<1x8x32xf32> to vector<8x32xf32>
    %c0_2 = arith.constant 0 : index
    %c0_3 = arith.constant 0 : index
    %c0_4 = arith.constant 0 : index
    %2 = vector.load %arg4[%c0_2, %c0_3, %c0_4] : memref<1x32x32xf32, #tpu.memory_space<vmem>>, vector<1x32x32xf32>
    %3 = vector.shape_cast %2 : vector<1x32x32xf32> to vector<32x32xf32>
    %c0_5 = arith.constant 0 : index
    %c0_6 = arith.constant 0 : index
    %c0_7 = arith.constant 0 : index
    %4 = vector.load %arg5[%c0_5, %c0_6, %c0_7] : memref<1x32x32xf32, #tpu.memory_space<vmem>>, vector<1x32x32xf32>
    %5 = vector.shape_cast %4 : vector<1x32x32xf32> to vector<32x32xf32>
    %c0_8 = arith.constant 0 : index
    %c0_9 = arith.constant 0 : index
    %6 = vector.load %arg6[%c0_8, %c0_9] : memref<32x32xf32, #tpu.memory_space<vmem>>, vector<32x32xf32>
    %cst = arith.constant dense<0.000000e+00> : vector<8x32xf32>
    %7 = tpu.matmul %1, %6, %cst {dimension_numbers = #tpu.dot_dimension_numbers<[1], [0], [0], [1], [0, 0, 1, 1], [], []>} : vector<8x32xf32>, vector<32x32xf32>, vector<8x32xf32> -> vector<8x32xf32>
    %c0_10 = arith.constant 0 : index
    %c0_11 = arith.constant 0 : index
    %8 = vector.load %arg7[%c0_10, %c0_11] : memref<1x32xf32, #tpu.memory_space<vmem>>, vector<1x32xf32>
    %9 = vector.broadcast %8 : vector<1x32xf32> to vector<8x32xf32>
    %10 = arith.addf %7, %9 : vector<8x32xf32>
    %cst_12 = arith.constant 0.353553385 : f32
    %11 = vector.broadcast %cst_12 : f32 to vector<8x32xf32>
    %12 = arith.mulf %10, %11 : vector<8x32xf32>
    %c0_13 = arith.constant 0 : index
    %c0_14 = arith.constant 0 : index
    %13 = vector.load %arg8[%c0_13, %c0_14] : memref<32x32xf32, #tpu.memory_space<vmem>>, vector<32x32xf32>
    %cst_15 = arith.constant dense<0.000000e+00> : vector<32x32xf32>
    %14 = tpu.matmul %3, %13, %cst_15 {dimension_numbers = #tpu.dot_dimension_numbers<[1], [0], [0], [1], [0, 0, 1, 1], [], []>} : vector<32x32xf32>, vector<32x32xf32>, vector<32x32xf32> -> vector<32x32xf32>
    %c0_16 = arith.constant 0 : index
    %c0_17 = arith.constant 0 : index
    %15 = vector.load %arg9[%c0_16, %c0_17] : memref<1x32xf32, #tpu.memory_space<vmem>>, vector<1x32xf32>
    %16 = vector.broadcast %15 : vector<1x32xf32> to vector<32x32xf32>
    %17 = arith.addf %14, %16 : vector<32x32xf32>
    %c0_18 = arith.constant 0 : index
    %c0_19 = arith.constant 0 : index
    %18 = vector.load %arg10[%c0_18, %c0_19] : memref<32x32xf32, #tpu.memory_space<vmem>>, vector<32x32xf32>
    %cst_20 = arith.constant dense<0.000000e+00> : vector<32x32xf32>
    %19 = tpu.matmul %5, %18, %cst_20 {dimension_numbers = #tpu.dot_dimension_numbers<[1], [0], [0], [1], [0, 0, 1, 1], [], []>} : vector<32x32xf32>, vector<32x32xf32>, vector<32x32xf32> -> vector<32x32xf32>
    %c0_21 = arith.constant 0 : index
    %c0_22 = arith.constant 0 : index
    %20 = vector.load %arg11[%c0_21, %c0_22] : memref<1x32xf32, #tpu.memory_space<vmem>>, vector<1x32xf32>
    %21 = vector.broadcast %20 : vector<1x32xf32> to vector<32x32xf32>
    %22 = arith.addf %19, %21 : vector<32x32xf32>
    %23 = vector.extract_strided_slice %12 {offsets = [0, 0], sizes = [8, 8], strides = [1, 1]} : vector<8x32xf32> to vector<8x8xf32>
    %24 = vector.extract_strided_slice %17 {offsets = [0, 0], sizes = [32, 8], strides = [1, 1]} : vector<32x32xf32> to vector<32x8xf32>
    %25 = vector.extract_strided_slice %22 {offsets = [0, 0], sizes = [32, 8], strides = [1, 1]} : vector<32x32xf32> to vector<32x8xf32>
    %cst_23 = arith.constant dense<0.000000e+00> : vector<8x32xf32>
    %26 = tpu.matmul %23, %24, %cst_23 {dimension_numbers = #tpu.dot_dimension_numbers<[1], [1], [0], [0], [0, 0, 1, 0], [], []>} : vector<8x8xf32>, vector<32x8xf32>, vector<8x32xf32> -> vector<8x32xf32>
    %cst_24 = arith.constant dense<0xFF800000> : vector<8xf32>
    %27 = vector.multi_reduction <maximumf>, %26, %cst_24 [1] : vector<8x32xf32> to vector<8xf32>
    %28 = vector.shape_cast %27 : vector<8xf32> to vector<8x1xf32>
    %29 = vector.broadcast %28 : vector<8x1xf32> to vector<8x32xf32>
    %30 = arith.subf %26, %29 : vector<8x32xf32>
    %31 = math.exp %30 : vector<8x32xf32>
    %cst_25 = arith.constant dense<0.000000e+00> : vector<8xf32>
    %32 = vector.multi_reduction <add>, %31, %cst_25 [1] : vector<8x32xf32> to vector<8xf32>
    %33 = vector.shape_cast %32 : vector<8xf32> to vector<8x1xf32>
    %34 = vector.broadcast %33 : vector<8x1xf32> to vector<8x32xf32>
    %35 = arith.divf %31, %34 : vector<8x32xf32>
    %cst_26 = arith.constant dense<0.000000e+00> : vector<8x8xf32>
    %36 = tpu.matmul %35, %25, %cst_26 {dimension_numbers = #tpu.dot_dimension_numbers<[1], [0], [0], [1], [0, 0, 1, 1], [], []>} : vector<8x32xf32>, vector<32x8xf32>, vector<8x8xf32> -> vector<8x8xf32>
    %37 = vector.extract_strided_slice %12 {offsets = [0, 8], sizes = [8, 8], strides = [1, 1]} : vector<8x32xf32> to vector<8x8xf32>
    %38 = vector.extract_strided_slice %17 {offsets = [0, 8], sizes = [32, 8], strides = [1, 1]} : vector<32x32xf32> to vector<32x8xf32>
    %39 = vector.extract_strided_slice %22 {offsets = [0, 8], sizes = [32, 8], strides = [1, 1]} : vector<32x32xf32> to vector<32x8xf32>
    %cst_27 = arith.constant dense<0.000000e+00> : vector<8x32xf32>
    %40 = tpu.matmul %37, %38, %cst_27 {dimension_numbers = #tpu.dot_dimension_numbers<[1], [1], [0], [0], [0, 0, 1, 0], [], []>} : vector<8x8xf32>, vector<32x8xf32>, vector<8x32xf32> -> vector<8x32xf32>
    %cst_28 = arith.constant dense<0xFF800000> : vector<8xf32>
    %41 = vector.multi_reduction <maximumf>, %40, %cst_28 [1] : vector<8x32xf32> to vector<8xf32>
    %42 = vector.shape_cast %41 : vector<8xf32> to vector<8x1xf32>
    %43 = vector.broadcast %42 : vector<8x1xf32> to vector<8x32xf32>
    %44 = arith.subf %40, %43 : vector<8x32xf32>
    %45 = math.exp %44 : vector<8x32xf32>
    %cst_29 = arith.constant dense<0.000000e+00> : vector<8xf32>
    %46 = vector.multi_reduction <add>, %45, %cst_29 [1] : vector<8x32xf32> to vector<8xf32>
    %47 = vector.shape_cast %46 : vector<8xf32> to vector<8x1xf32>
    %48 = vector.broadcast %47 : vector<8x1xf32> to vector<8x32xf32>
    %49 = arith.divf %45, %48 : vector<8x32xf32>
    %cst_30 = arith.constant dense<0.000000e+00> : vector<8x8xf32>
    %50 = tpu.matmul %49, %39, %cst_30 {dimension_numbers = #tpu.dot_dimension_numbers<[1], [0], [0], [1], [0, 0, 1, 1], [], []>} : vector<8x32xf32>, vector<32x8xf32>, vector<8x8xf32> -> vector<8x8xf32>
    %51 = vector.extract_strided_slice %12 {offsets = [0, 16], sizes = [8, 8], strides = [1, 1]} : vector<8x32xf32> to vector<8x8xf32>
    %52 = vector.extract_strided_slice %17 {offsets = [0, 16], sizes = [32, 8], strides = [1, 1]} : vector<32x32xf32> to vector<32x8xf32>
    %53 = vector.extract_strided_slice %22 {offsets = [0, 16], sizes = [32, 8], strides = [1, 1]} : vector<32x32xf32> to vector<32x8xf32>
    %cst_31 = arith.constant dense<0.000000e+00> : vector<8x32xf32>
    %54 = tpu.matmul %51, %52, %cst_31 {dimension_numbers = #tpu.dot_dimension_numbers<[1], [1], [0], [0], [0, 0, 1, 0], [], []>} : vector<8x8xf32>, vector<32x8xf32>, vector<8x32xf32> -> vector<8x32xf32>
    %cst_32 = arith.constant dense<0xFF800000> : vector<8xf32>
    %55 = vector.multi_reduction <maximumf>, %54, %cst_32 [1] : vector<8x32xf32> to vector<8xf32>
    %56 = vector.shape_cast %55 : vector<8xf32> to vector<8x1xf32>
    %57 = vector.broadcast %56 : vector<8x1xf32> to vector<8x32xf32>
    %58 = arith.subf %54, %57 : vector<8x32xf32>
    %59 = math.exp %58 : vector<8x32xf32>
    %cst_33 = arith.constant dense<0.000000e+00> : vector<8xf32>
    %60 = vector.multi_reduction <add>, %59, %cst_33 [1] : vector<8x32xf32> to vector<8xf32>
    %61 = vector.shape_cast %60 : vector<8xf32> to vector<8x1xf32>
    %62 = vector.broadcast %61 : vector<8x1xf32> to vector<8x32xf32>
    %63 = arith.divf %59, %62 : vector<8x32xf32>
    %cst_34 = arith.constant dense<0.000000e+00> : vector<8x8xf32>
    %64 = tpu.matmul %63, %53, %cst_34 {dimension_numbers = #tpu.dot_dimension_numbers<[1], [0], [0], [1], [0, 0, 1, 1], [], []>} : vector<8x32xf32>, vector<32x8xf32>, vector<8x8xf32> -> vector<8x8xf32>
    %65 = vector.extract_strided_slice %12 {offsets = [0, 24], sizes = [8, 8], strides = [1, 1]} : vector<8x32xf32> to vector<8x8xf32>
    %66 = vector.extract_strided_slice %17 {offsets = [0, 24], sizes = [32, 8], strides = [1, 1]} : vector<32x32xf32> to vector<32x8xf32>
    %67 = vector.extract_strided_slice %22 {offsets = [0, 24], sizes = [32, 8], strides = [1, 1]} : vector<32x32xf32> to vector<32x8xf32>
    %cst_35 = arith.constant dense<0.000000e+00> : vector<8x32xf32>
    %68 = tpu.matmul %65, %66, %cst_35 {dimension_numbers = #tpu.dot_dimension_numbers<[1], [1], [0], [0], [0, 0, 1, 0], [], []>} : vector<8x8xf32>, vector<32x8xf32>, vector<8x32xf32> -> vector<8x32xf32>
    %cst_36 = arith.constant dense<0xFF800000> : vector<8xf32>
    %69 = vector.multi_reduction <maximumf>, %68, %cst_36 [1] : vector<8x32xf32> to vector<8xf32>
    %70 = vector.shape_cast %69 : vector<8xf32> to vector<8x1xf32>
    %71 = vector.broadcast %70 : vector<8x1xf32> to vector<8x32xf32>
    %72 = arith.subf %68, %71 : vector<8x32xf32>
    %73 = math.exp %72 : vector<8x32xf32>
    %cst_37 = arith.constant dense<0.000000e+00> : vector<8xf32>
    %74 = vector.multi_reduction <add>, %73, %cst_37 [1] : vector<8x32xf32> to vector<8xf32>
    %75 = vector.shape_cast %74 : vector<8xf32> to vector<8x1xf32>
    %76 = vector.broadcast %75 : vector<8x1xf32> to vector<8x32xf32>
    %77 = arith.divf %73, %76 : vector<8x32xf32>
    %cst_38 = arith.constant dense<0.000000e+00> : vector<8x8xf32>
    %78 = tpu.matmul %77, %67, %cst_38 {dimension_numbers = #tpu.dot_dimension_numbers<[1], [0], [0], [1], [0, 0, 1, 1], [], []>} : vector<8x32xf32>, vector<32x8xf32>, vector<8x8xf32> -> vector<8x8xf32>
    %79 = tpu.concatenate %36, %50, %64, %78 in 1 : vector<8x8xf32>, vector<8x8xf32>, vector<8x8xf32>, vector<8x8xf32> -> vector<8x32xf32>
    %c0_39 = arith.constant 0 : index
    %c0_40 = arith.constant 0 : index
    %80 = vector.load %arg12[%c0_39, %c0_40] : memref<32x32xf32, #tpu.memory_space<vmem>>, vector<32x32xf32>
    %cst_41 = arith.constant dense<0.000000e+00> : vector<8x32xf32>
    %81 = tpu.matmul %79, %80, %cst_41 {dimension_numbers = #tpu.dot_dimension_numbers<[1], [0], [0], [1], [0, 0, 1, 1], [], []>} : vector<8x32xf32>, vector<32x32xf32>, vector<8x32xf32> -> vector<8x32xf32>
    %c0_42 = arith.constant 0 : index
    %c0_43 = arith.constant 0 : index
    %82 = vector.load %arg13[%c0_42, %c0_43] : memref<1x32xf32, #tpu.memory_space<vmem>>, vector<1x32xf32>
    %83 = vector.broadcast %82 : vector<1x32xf32> to vector<8x32xf32>
    %84 = arith.addf %81, %83 : vector<8x32xf32>
    %c0_44 = arith.constant 0 : index
    %c0_45 = arith.constant 0 : index
    %c0_46 = arith.constant 0 : index
    %85 = vector.load %arg2[%c0_44, %c0_45, %c0_46] : memref<1x8x32xf32, #tpu.memory_space<vmem>>, vector<1x8x32xf32>
    %86 = vector.shape_cast %85 : vector<1x8x32xf32> to vector<8x32xf32>
    %87 = arith.addf %86, %84 : vector<8x32xf32>
    %cst_47 = arith.constant dense<0.000000e+00> : vector<8xf32>
    %88 = vector.multi_reduction <add>, %87, %cst_47 [1] : vector<8x32xf32> to vector<8xf32>
    %89 = vector.shape_cast %88 : vector<8xf32> to vector<8x1xf32>
    %cst_48 = arith.constant 3.200000e+01 : f32
    %90 = vector.broadcast %cst_48 : f32 to vector<8x1xf32>
    %91 = arith.divf %89, %90 : vector<8x1xf32>
    %92 = vector.broadcast %91 : vector<8x1xf32> to vector<8x32xf32>
    %93 = arith.subf %87, %92 : vector<8x32xf32>
    %94 = arith.mulf %93, %93 : vector<8x32xf32>
    %cst_49 = arith.constant dense<0.000000e+00> : vector<8xf32>
    %95 = vector.multi_reduction <add>, %94, %cst_49 [1] : vector<8x32xf32> to vector<8xf32>
    %96 = vector.shape_cast %95 : vector<8xf32> to vector<8x1xf32>
    %cst_50 = arith.constant 3.200000e+01 : f32
    %97 = vector.broadcast %cst_50 : f32 to vector<8x1xf32>
    %98 = arith.divf %96, %97 : vector<8x1xf32>
    %cst_51 = arith.constant 9.99999974E-6 : f32
    %99 = vector.broadcast %cst_51 : f32 to vector<8x1xf32>
    %100 = arith.addf %98, %99 : vector<8x1xf32>
    %101 = math.rsqrt %100 : vector<8x1xf32>
    %102 = vector.broadcast %101 : vector<8x1xf32> to vector<8x32xf32>
    %103 = arith.mulf %93, %102 : vector<8x32xf32>
    %c0_52 = arith.constant 0 : index
    %c0_53 = arith.constant 0 : index
    %104 = vector.load %arg14[%c0_52, %c0_53] : memref<1x32xf32, #tpu.memory_space<vmem>>, vector<1x32xf32>
    %105 = vector.broadcast %104 : vector<1x32xf32> to vector<8x32xf32>
    %106 = arith.mulf %103, %105 : vector<8x32xf32>
    %c0_54 = arith.constant 0 : index
    %c0_55 = arith.constant 0 : index
    %107 = vector.load %arg15[%c0_54, %c0_55] : memref<1x32xf32, #tpu.memory_space<vmem>>, vector<1x32xf32>
    %108 = vector.broadcast %107 : vector<1x32xf32> to vector<8x32xf32>
    %109 = arith.addf %106, %108 : vector<8x32xf32>
    %c0_56 = arith.constant 0 : index
    %c0_57 = arith.constant 0 : index
    %c0_58 = arith.constant 0 : index
    %110 = vector.load %arg16[%c0_56, %c0_57, %c0_58] : memref<1x8x32xf32, #tpu.memory_space<vmem>>, vector<1x8x32xf32>
    %111 = vector.shape_cast %110 : vector<1x8x32xf32> to vector<8x32xf32>
    %112 = vector.shape_cast %109 : vector<8x32xf32> to vector<1x8x32xf32>
    tpu.vector_store %arg16[%c0_56, %c0_57, %c0_58], %112 {strides = array<i32>} : memref<1x8x32xf32, #tpu.memory_space<vmem>>, vector<1x8x32xf32>,
    return
  }
  func.func @transform_0(%arg0: i32, %arg1: i32) -> (i32, i32, i32) {
    %c0_i32 = arith.constant 0 : i32
    %c0_i32_0 = arith.constant 0 : i32
    return %arg0, %arg1, %c0_i32 : i32, i32, i32
  }
  func.func @transform_1(%arg0: i32, %arg1: i32) -> (i32, i32, i32) {
    %c0_i32 = arith.constant 0 : i32
    %c0_i32_0 = arith.constant 0 : i32
    return %arg0, %arg1, %c0_i32 : i32, i32, i32
  }
  func.func @transform_2(%arg0: i32, %arg1: i32) -> (i32, i32, i32) {
    %c0_i32 = arith.constant 0 : i32
    %c0_i32_0 = arith.constant 0 : i32
    %c0_i32_1 = arith.constant 0 : i32
    return %arg0, %c0_i32, %c0_i32_0 : i32, i32, i32
  }
  func.func @transform_3(%arg0: i32, %arg1: i32) -> (i32, i32, i32) {
    %c0_i32 = arith.constant 0 : i32
    %c0_i32_0 = arith.constant 0 : i32
    %c0_i32_1 = arith.constant 0 : i32
    return %arg0, %c0_i32, %c0_i32_0 : i32, i32, i32
  }
  func.func @transform_4(%arg0: i32, %arg1: i32) -> (i32, i32) {
    %c0_i32 = arith.constant 0 : i32
    %c0_i32_0 = arith.constant 0 : i32
    %c0_i32_1 = arith.constant 0 : i32
    return %c0_i32, %c0_i32_0 : i32, i32
  }
  func.func @transform_5(%arg0: i32, %arg1: i32) -> (i32, i32) {
    %c0_i32 = arith.constant 0 : i32
    %c0_i32_0 = arith.constant 0 : i32
    %c0_i32_1 = arith.constant 0 : i32
    return %c0_i32, %c0_i32_0 : i32, i32
  }
  func.func @transform_6(%arg0: i32, %arg1: i32) -> (i32, i32) {
    %c0_i32 = arith.constant 0 : i32
    %c0_i32_0 = arith.constant 0 : i32
    %c0_i32_1 = arith.constant 0 : i32
    return %c0_i32, %c0_i32_0 : i32, i32
  }
  func.func @transform_7(%arg0: i32, %arg1: i32) -> (i32, i32) {
    %c0_i32 = arith.constant 0 : i32
    %c0_i32_0 = arith.constant 0 : i32
    %c0_i32_1 = arith.constant 0 : i32
    return %c0_i32, %c0_i32_0 : i32, i32
  }
  func.func @transform_8(%arg0: i32, %arg1: i32) -> (i32, i32) {
    %c0_i32 = arith.constant 0 : i32
    %c0_i32_0 = arith.constant 0 : i32
    %c0_i32_1 = arith.constant 0 : i32
    return %c0_i32, %c0_i32_0 : i32, i32
  }
  func.func @transform_9(%arg0: i32, %arg1: i32) -> (i32, i32) {
    %c0_i32 = arith.constant 0 : i32
    %c0_i32_0 = arith.constant 0 : i32
    %c0_i32_1 = arith.constant 0 : i32
    return %c0_i32, %c0_i32_0 : i32, i32
  }
  func.func @transform_10(%arg0: i32, %arg1: i32) -> (i32, i32) {
    %c0_i32 = arith.constant 0 : i32
    %c0_i32_0 = arith.constant 0 : i32
    %c0_i32_1 = arith.constant 0 : i32
    return %c0_i32, %c0_i32_0 : i32, i32
  }
  func.func @transform_11(%arg0: i32, %arg1: i32) -> (i32, i32) {
    %c0_i32 = arith.constant 0 : i32
    %c0_i32_0 = arith.constant 0 : i32
    %c0_i32_1 = arith.constant 0 : i32
    return %c0_i32, %c0_i32_0 : i32, i32
  }
  func.func @transform_12(%arg0: i32, %arg1: i32) -> (i32, i32) {
    %c0_i32 = arith.constant 0 : i32
    %c0_i32_0 = arith.constant 0 : i32
    %c0_i32_1 = arith.constant 0 : i32
    return %c0_i32, %c0_i32_0 : i32, i32
  }
  func.func @transform_13(%arg0: i32, %arg1: i32) -> (i32, i32) {
    %c0_i32 = arith.constant 0 : i32
    %c0_i32_0 = arith.constant 0 : i32
    %c0_i32_1 = arith.constant 0 : i32
    return %c0_i32, %c0_i32_0 : i32, i32
  }
  func.func @transform_14(%arg0: i32, %arg1: i32) -> (i32, i32, i32) {
    %c0_i32 = arith.constant 0 : i32
    %c0_i32_0 = arith.constant 0 : i32
    return %arg0, %arg1, %c0_i32 : i32, i32, i32
  }
}

</mosaic_0001>

<llo_original>
// kernel: tpu_custom_call.1
$region0: #{tpu_custom_call.1}
  #allocation0 [shape = 'u32[]', space=smem, size = 0x4, offset = 0x4, fixed_abs, tag = 'smem constant byte address 0x4 - core index']
  #allocation1 [shape = 'u32[144,128]{1,0:T(1,128)}', space=vmem, size = 0x12000, scoped, tag = 'internal scratch']
  %s0 = inlined_call_operand.hbm [shape: f32[2,8,32], index: 0, kind: input, shape index: {}]
  %s1 = inlined_call_operand.hbm [shape: f32[2,8,32], index: 1, kind: input, shape index: {}]
  %s2 = inlined_call_operand.hbm [shape: f32[2,32,32], index: 2, kind: input, shape index: {}]
  %s3 = inlined_call_operand.hbm [shape: f32[2,32,32], index: 3, kind: input, shape index: {}]
  %s4 = inlined_call_operand.hbm [shape: f32[32,32], index: 4, kind: input, shape index: {}]
  %s5 = inlined_call_operand.vmem [shape: f32[1,32], index: 5, kind: input, shape index: {}]
  %s6 = inlined_call_operand.hbm [shape: f32[32,32], index: 6, kind: input, shape index: {}]
  %s7 = inlined_call_operand.vmem [shape: f32[1,32], index: 7, kind: input, shape index: {}]
  %s8 = inlined_call_operand.hbm [shape: f32[32,32], index: 8, kind: input, shape index: {}]
  %s9 = inlined_call_operand.vmem [shape: f32[1,32], index: 9, kind: input, shape index: {}]
  %s10 = inlined_call_operand.vmem [shape: f32[32,32], index: 10, kind: input, shape index: {}]
  %s11 = inlined_call_operand.vmem [shape: f32[1,32], index: 11, kind: input, shape index: {}]
  %s12 = inlined_call_operand.vmem [shape: f32[1,32], index: 12, kind: input, shape index: {}]
  %s13 = inlined_call_operand.vmem [shape: f32[1,32], index: 13, kind: input, shape index: {}]
  %s14 = inlined_call_operand.hbm [shape: f32[2,8,32], index: 14, kind: output, shape index: {}]
  %s15 = sld [smem:[#allocation0]]
  $region117: #{tpu_custom_call.1} parent=0
    _
  %s17 = ssub.s32 1, %s15
  %s18 = scalar_select 0, %s17, %s15
  $region1: #{tpu_custom_call.1} parent=0
    #allocation2 [shape = 'u8[8192]{0}', space=vmem, size = 0x2000, scoped, tag = 'input window, operand 0']
    #allocation3 [shape = 's32[2]{0}', space=sflag, size = 0x8, scoped, tag = 'scoped memory for tpu_custom_call.1']
    #allocation4 [shape = 's32[2]{0}', space=sflag, size = 0x8, scoped, tag = 'scoped memory for tpu_custom_call.1']
    #allocation5 [shape = 'u8[8192]{0}', space=vmem, size = 0x2000, scoped, tag = 'input window, operand 1']
    #allocation6 [shape = 's32[2]{0}', space=sflag, size = 0x8, scoped, tag = 'scoped memory for tpu_custom_call.1']
    #allocation7 [shape = 'u8[32768]{0}', space=vmem, size = 0x8000, scoped, tag = 'input window, operand 2']
    #allocation8 [shape = 'u8[32768]{0}', space=vmem, size = 0x8000, scoped, tag = 'input window, operand 3']
    #allocation9 [shape = 's32[2]{0}', space=sflag, size = 0x8, scoped, tag = 'scoped memory for tpu_custom_call.1']
    #allocation10 [shape = 'u8[16384]{0}', space=vmem, size = 0x4000, scoped, tag = 'input window, operand 4, single buffered']
    #allocation11 [shape = 'u8[16384]{0}', space=vmem, size = 0x4000, scoped, tag = 'input window, operand 6, single buffered']
    #allocation12 [shape = 's32[1]{0}', space=sflag, size = 0x4, scoped, tag = 'scoped memory for tpu_custom_call.1']
    #allocation13 [shape = 'u8[16384]{0}', space=vmem, size = 0x4000, scoped, tag = 'input window, operand 8, single buffered']
    #allocation14 [shape = 'u8[8192]{0}', space=vmem, size = 0x2000, scoped, tag = 'output window, operand 0']
    %19 = vsyncpa [#allocation3], 0
    %s20 = scalar_lea.sflag [#allocation3], 1
    %21 = vsyncpa %s20, 0
    %22 = vsyncpa [#allocation6], 0
    %s23 = scalar_lea.sflag [#allocation6], 1
    %24 = vsyncpa %s23, 0
    %25 = vsyncpa [#allocation9], 0
    %s26 = scalar_lea.sflag [#allocation9], 1
    %27 = vsyncpa %s26, 0
    %28 = vsyncpa [#allocation12], 0
    %29 = vsyncpa [#allocation4], 0
    %s30 = scalar_lea.sflag [#allocation4], 1
    %31 = vsyncpa %s30, 0
    loop: start=0, step=1, limit=4
    $region2: #{tpu_custom_call.1} parent=1 // loop_pre_header
      _
    $region3: #{tpu_custom_call.1} parent=1 // loop_header
      %s33 = sphi 0, %s37
      %p34 = scmp.ge.s32.totalorder %s33, 4
      %s40 = sphi 0, %s52
      %s41 = sphi 0, %s48
      %s42 = sphi 0, %s40
      %s43 = sphi 0, %s41
      %s44 = sphi 0, %s42
      %s45 = sphi 0, %s43
      %s57 = sphi 0, %s59
      %s60 = sphi 0, %s57
      %s61 = sphi 0, %s60
      %s77 = sphi 0, %s61
      %s85 = sphi 0, %s87
      %s88 = sphi 0, %s85
      %s89 = sphi 0, %s88
      %s105 = sphi 0, %s89
      %s111 = sphi 0, %s113
      %s114 = sphi 0, %s111
      %s115 = sphi 0, %s114
      %s131 = sphi 0, %s115
      %s137 = sphi 0, %s139
      %s140 = sphi 0, %s137
      %s141 = sphi 0, %s140
      %s157 = sphi 0, %s141
      %s161 = sphi 0, %s161
      %s163 = sphi 0, %s161
      %s164 = sphi 0, %s163
      %s178 = sphi 0, %s164
      %s182 = sphi 0, %s182
      %s184 = sphi 0, %s182
      %s185 = sphi 0, %s184
      %s199 = sphi 0, %s185
      %s203 = sphi 0, %s203
      %s205 = sphi 0, %s203
      %s206 = sphi 0, %s205
      %s220 = sphi 0, %s206
      %s224 = sphi 0, %s224
      %s226 = sphi 0, %s224
      %s227 = sphi 0, %s226
      %s241 = sphi 0, %s227
      %s245 = sphi 0, %s245
      %s247 = sphi 0, %s245
      %s248 = sphi 0, %s247
      %s262 = sphi 0, %s248
      %s266 = sphi 0, %s266
      %s268 = sphi 0, %s266
      %s269 = sphi 0, %s268
      %s283 = sphi 0, %s269
      %s287 = sphi 0, %s287
      %s289 = sphi 0, %s287
      %s290 = sphi 0, %s289
      %s304 = sphi 0, %s290
      %s308 = sphi 0, %s308
      %s310 = sphi 0, %s308
      %s311 = sphi 0, %s310
      %s325 = sphi 0, %s311
      %s329 = sphi 0, %s329
      %s331 = sphi 0, %s329
      %s332 = sphi 0, %s331
      %s346 = sphi 0, %s332
      %s350 = sphi 0, %s350
      %s352 = sphi 0, %s350
      %s353 = sphi 0, %s352
      %s367 = sphi 0, %s353
      %s375 = sphi 0, %s377
      %s378 = sphi 0, %s375
      %s379 = sphi 0, %s378
      %s395 = sphi 0, %s379
    $region4: #{tpu_custom_call.1} parent=1 // loop_header_branch
      %36 = sbr.rel (%p34) target = $region8
    $region5: #{tpu_custom_call.1} parent=1 // loop_body
      %s38 = ssub.s32 %s33, 1
      %s39 = ssub.s32 %s33, 2
      %s46 = sadd.s32 1, %s41
      %p47 = scmp.ge.s32.totalorder %s46, 1
      %s48 = scalar_select %p47, 0, %s46
      %s49 = sadd.s32 1, %s40
      %s50 = scalar_select %p47, %s49, %s40
      %p51 = scmp.ge.s32.totalorder %s50, 2
      %s52 = scalar_select %p51, 0, %s50
      %s53 = ssub.s32 %s40, %s52
      %s54 = ssub.s32 %s41, %s48
      %s55 = sor.u32 %s53, %s54
      %p56 = scmp.eq.s32.totalorder %s55, 0
      %s58 = sadd.s32 %s57, 1
      %s59 = scalar_select %p56, %s57, %s58
      %p62 = pneg %p56
      %p63 = scmp.eq.s32.totalorder %s33, 1
      %p64 = por %p62, %p63
      %p65 = scmp.ne.s32.totalorder %s57, %s60
      %p66 = scmp.eq.s32.totalorder %s33, 0
      %p67 = por %p65, %p66
      %p68 = scmp.ne.s32.totalorder %s57, %s60
      %p69 = scmp.eq.s32.totalorder %s38, 1
      %p70 = por %p68, %p69
      %p71 = scmp.ne.s32.totalorder %s60, %s61
      %p72 = scmp.eq.s32.totalorder %s38, 0
      %p73 = por %p71, %p72
      %p74 = scmp.ne.s32.totalorder %s60, %s61
      %p75 = scmp.eq.s32.totalorder %s39, 1
      %p76 = por %p74, %p75
      %p78 = scmp.ne.s32.totalorder %s61, %s77
      %p79 = scmp.eq.s32.totalorder %s39, 0
      %p80 = por %p78, %p79
      %s81 = ssub.s32 %s40, %s52
      %s82 = ssub.s32 %s41, %s48
      %s83 = sor.u32 %s81, %s82
      %p84 = scmp.eq.s32.totalorder %s83, 0
      %s86 = sadd.s32 %s85, 1
      %s87 = scalar_select %p84, %s85, %s86
      %p90 = pneg %p84
      %p91 = scmp.eq.s32.totalorder %s33, 1
      %p92 = por %p90, %p91
      %p93 = scmp.ne.s32.totalorder %s85, %s88
      %p94 = scmp.eq.s32.totalorder %s33, 0
      %p95 = por %p93, %p94
      %p96 = scmp.ne.s32.totalorder %s85, %s88
      %p97 = scmp.eq.s32.totalorder %s38, 1
      %p98 = por %p96, %p97
      %p99 = scmp.ne.s32.totalorder %s88, %s89
      %p100 = scmp.eq.s32.totalorder %s38, 0
      %p101 = por %p99, %p100
      %p102 = scmp.ne.s32.totalorder %s88, %s89
      %p103 = scmp.eq.s32.totalorder %s39, 1
      %p104 = por %p102, %p103
      %p106 = scmp.ne.s32.totalorder %s89, %s105
      %p107 = scmp.eq.s32.totalorder %s39, 0
      %p108 = por %p106, %p107
      %s109 = ssub.s32 %s40, %s52
      %p110 = scmp.eq.s32.totalorder %s109, 0
      %s112 = sadd.s32 %s111, 1
      %s113 = scalar_select %p110, %s111, %s112
      %p116 = pneg %p110
      %p117 = scmp.eq.s32.totalorder %s33, 1
      %p118 = por %p116, %p117
      %p119 = scmp.ne.s32.totalorder %s111, %s114
      %p120 = scmp.eq.s32.totalorder %s33, 0
      %p121 = por %p119, %p120
      %p122 = scmp.ne.s32.totalorder %s111, %s114
      %p123 = scmp.eq.s32.totalorder %s38, 1
      %p124 = por %p122, %p123
      %p125 = scmp.ne.s32.totalorder %s114, %s115
      %p126 = scmp.eq.s32.totalorder %s38, 0
      %p127 = por %p125, %p126
      %p128 = scmp.ne.s32.totalorder %s114, %s115
      %p129 = scmp.eq.s32.totalorder %s39, 1
      %p130 = por %p128, %p129
      %p132 = scmp.ne.s32.totalorder %s115, %s131
      %p133 = scmp.eq.s32.totalorder %s39, 0
      %p134 = por %p132, %p133
      %s135 = ssub.s32 %s40, %s52
      %p136 = scmp.eq.s32.totalorder %s135, 0
      %s138 = sadd.s32 %s137, 1
      %s139 = scalar_select %p136, %s137, %s138
      %p142 = pneg %p136
      %p143 = scmp.eq.s32.totalorder %s33, 1
      %p144 = por %p142, %p143
      %p145 = scmp.ne.s32.totalorder %s137, %s140
      %p146 = scmp.eq.s32.totalorder %s33, 0
      %p147 = por %p145, %p146
      %p148 = scmp.ne.s32.totalorder %s137, %s140
      %p149 = scmp.eq.s32.totalorder %s38, 1
      %p150 = por %p148, %p149
      %p151 = scmp.ne.s32.totalorder %s140, %s141
      %p152 = scmp.eq.s32.totalorder %s38, 0
      %p153 = por %p151, %p152
      %p154 = scmp.ne.s32.totalorder %s140, %s141
      %p155 = scmp.eq.s32.totalorder %s39, 1
      %p156 = por %p154, %p155
      %p158 = scmp.ne.s32.totalorder %s141, %s157
      %p159 = scmp.eq.s32.totalorder %s39, 0
      %p160 = por %p158, %p159
      %s162 = sadd.s32 %s161, 1
      %p165 = scmp.eq.s32.totalorder %s33, 1
      %p166 = scmp.ne.s32.totalorder %s161, %s163
      %p167 = scmp.eq.s32.totalorder %s33, 0
      %p168 = por %p166, %p167
      %p169 = scmp.ne.s32.totalorder %s161, %s163
      %p170 = scmp.eq.s32.totalorder %s38, 1
      %p171 = por %p169, %p170
      %p172 = scmp.ne.s32.totalorder %s163, %s164
      %p173 = scmp.eq.s32.totalorder %s38, 0
      %p174 = por %p172, %p173
      %p175 = scmp.ne.s32.totalorder %s163, %s164
      %p176 = scmp.eq.s32.totalorder %s39, 1
      %p177 = por %p175, %p176
      %p179 = scmp.ne.s32.totalorder %s164, %s178
      %p180 = scmp.eq.s32.totalorder %s39, 0
      %p181 = por %p179, %p180
      %s183 = sadd.s32 %s182, 1
      %p186 = scmp.eq.s32.totalorder %s33, 1
      %p187 = scmp.ne.s32.totalorder %s182, %s184
      %p188 = scmp.eq.s32.totalorder %s33, 0
      %p189 = por %p187, %p188
      %p190 = scmp.ne.s32.totalorder %s182, %s184
      %p191 = scmp.eq.s32.totalorder %s38, 1
      %p192 = por %p190, %p191
      %p193 = scmp.ne.s32.totalorder %s184, %s185
      %p194 = scmp.eq.s32.totalorder %s38, 0
      %p195 = por %p193, %p194
      %p196 = scmp.ne.s32.totalorder %s184, %s185
      %p197 = scmp.eq.s32.totalorder %s39, 1
      %p198 = por %p196, %p197
      %p200 = scmp.ne.s32.totalorder %s185, %s199
      %p201 = scmp.eq.s32.totalorder %s39, 0
      %p202 = por %p200, %p201
      %s204 = sadd.s32 %s203, 1
      %p207 = scmp.eq.s32.totalorder %s33, 1
      %p208 = scmp.ne.s32.totalorder %s203, %s205
      %p209 = scmp.eq.s32.totalorder %s33, 0
      %p210 = por %p208, %p209
      %p211 = scmp.ne.s32.totalorder %s203, %s205
      %p212 = scmp.eq.s32.totalorder %s38, 1
      %p213 = por %p211, %p212
      %p214 = scmp.ne.s32.totalorder %s205, %s206
      %p215 = scmp.eq.s32.totalorder %s38, 0
      %p216 = por %p214, %p215
      %p217 = scmp.ne.s32.totalorder %s205, %s206
      %p218 = scmp.eq.s32.totalorder %s39, 1
      %p219 = por %p217, %p218
      %p221 = scmp.ne.s32.totalorder %s206, %s220
      %p222 = scmp.eq.s32.totalorder %s39, 0
      %p223 = por %p221, %p222
      %s225 = sadd.s32 %s224, 1
      %p228 = scmp.eq.s32.totalorder %s33, 1
      %p229 = scmp.ne.s32.totalorder %s224, %s226
      %p230 = scmp.eq.s32.totalorder %s33, 0
      %p231 = por %p229, %p230
      %p232 = scmp.ne.s32.totalorder %s224, %s226
      %p233 = scmp.eq.s32.totalorder %s38, 1
      %p234 = por %p232, %p233
      %p235 = scmp.ne.s32.totalorder %s226, %s227
      %p236 = scmp.eq.s32.totalorder %s38, 0
      %p237 = por %p235, %p236
      %p238 = scmp.ne.s32.totalorder %s226, %s227
      %p239 = scmp.eq.s32.totalorder %s39, 1
      %p240 = por %p238, %p239
      %p242 = scmp.ne.s32.totalorder %s227, %s241
      %p243 = scmp.eq.s32.totalorder %s39, 0
      %p244 = por %p242, %p243
      %s246 = sadd.s32 %s245, 1
      %p249 = scmp.eq.s32.totalorder %s33, 1
      %p250 = scmp.ne.s32.totalorder %s245, %s247
      %p251 = scmp.eq.s32.totalorder %s33, 0
      %p252 = por %p250, %p251
      %p253 = scmp.ne.s32.totalorder %s245, %s247
      %p254 = scmp.eq.s32.totalorder %s38, 1
      %p255 = por %p253, %p254
      %p256 = scmp.ne.s32.totalorder %s247, %s248
      %p257 = scmp.eq.s32.totalorder %s38, 0
      %p258 = por %p256, %p257
      %p259 = scmp.ne.s32.totalorder %s247, %s248
      %p260 = scmp.eq.s32.totalorder %s39, 1
      %p261 = por %p259, %p260
      %p263 = scmp.ne.s32.totalorder %s248, %s262
      %p264 = scmp.eq.s32.totalorder %s39, 0
      %p265 = por %p263, %p264
      %s267 = sadd.s32 %s266, 1
      %p270 = scmp.eq.s32.totalorder %s33, 1
      %p271 = scmp.ne.s32.totalorder %s266, %s268
      %p272 = scmp.eq.s32.totalorder %s33, 0
      %p273 = por %p271, %p272
      %p274 = scmp.ne.s32.totalorder %s266, %s268
      %p275 = scmp.eq.s32.totalorder %s38, 1
      %p276 = por %p274, %p275
      %p277 = scmp.ne.s32.totalorder %s268, %s269
      %p278 = scmp.eq.s32.totalorder %s38, 0
      %p279 = por %p277, %p278
      %p280 = scmp.ne.s32.totalorder %s268, %s269
      %p281 = scmp.eq.s32.totalorder %s39, 1
      %p282 = por %p280, %p281
      %p284 = scmp.ne.s32.totalorder %s269, %s283
      %p285 = scmp.eq.s32.totalorder %s39, 0
      %p286 = por %p284, %p285
      %s288 = sadd.s32 %s287, 1
      %p291 = scmp.eq.s32.totalorder %s33, 1
      %p292 = scmp.ne.s32.totalorder %s287, %s289
      %p293 = scmp.eq.s32.totalorder %s33, 0
      %p294 = por %p292, %p293
      %p295 = scmp.ne.s32.totalorder %s287, %s289
      %p296 = scmp.eq.s32.totalorder %s38, 1
      %p297 = por %p295, %p296
      %p298 = scmp.ne.s32.totalorder %s289, %s290
      %p299 = scmp.eq.s32.totalorder %s38, 0
      %p300 = por %p298, %p299
      %p301 = scmp.ne.s32.totalorder %s289, %s290
      %p302 = scmp.eq.s32.totalorder %s39, 1
      %p303 = por %p301, %p302
      %p305 = scmp.ne.s32.totalorder %s290, %s304
      %p306 = scmp.eq.s32.totalorder %s39, 0
      %p307 = por %p305, %p306
      %s309 = sadd.s32 %s308, 1
      %p312 = scmp.eq.s32.totalorder %s33, 1
      %p313 = scmp.ne.s32.totalorder %s308, %s310
      %p314 = scmp.eq.s32.totalorder %s33, 0
      %p315 = por %p313, %p314
      %p316 = scmp.ne.s32.totalorder %s308, %s310
      %p317 = scmp.eq.s32.totalorder %s38, 1
      %p318 = por %p316, %p317
      %p319 = scmp.ne.s32.totalorder %s310, %s311
      %p320 = scmp.eq.s32.totalorder %s38, 0
      %p321 = por %p319, %p320
      %p322 = scmp.ne.s32.totalorder %s310, %s311
      %p323 = scmp.eq.s32.totalorder %s39, 1
      %p324 = por %p322, %p323
      %p326 = scmp.ne.s32.totalorder %s311, %s325
      %p327 = scmp.eq.s32.totalorder %s39, 0
      %p328 = por %p326, %p327
      %s330 = sadd.s32 %s329, 1
      %p333 = scmp.eq.s32.totalorder %s33, 1
      %p334 = scmp.ne.s32.totalorder %s329, %s331
      %p335 = scmp.eq.s32.totalorder %s33, 0
      %p336 = por %p334, %p335
      %p337 = scmp.ne.s32.totalorder %s329, %s331
      %p338 = scmp.eq.s32.totalorder %s38, 1
      %p339 = por %p337, %p338
      %p340 = scmp.ne.s32.totalorder %s331, %s332
      %p341 = scmp.eq.s32.totalorder %s38, 0
      %p342 = por %p340, %p341
      %p343 = scmp.ne.s32.totalorder %s331, %s332
      %p344 = scmp.eq.s32.totalorder %s39, 1
      %p345 = por %p343, %p344
      %p347 = scmp.ne.s32.totalorder %s332, %s346
      %p348 = scmp.eq.s32.totalorder %s39, 0
      %p349 = por %p347, %p348
      %s351 = sadd.s32 %s350, 1
      %p354 = scmp.eq.s32.totalorder %s33, 1
      %p355 = scmp.ne.s32.totalorder %s350, %s352
      %p356 = scmp.eq.s32.totalorder %s33, 0
      %p357 = por %p355, %p356
      %p358 = scmp.ne.s32.totalorder %s350, %s352
      %p359 = scmp.eq.s32.totalorder %s38, 1
      %p360 = por %p358, %p359
      %p361 = scmp.ne.s32.totalorder %s352, %s353
      %p362 = scmp.eq.s32.totalorder %s38, 0
      %p363 = por %p361, %p362
      %p364 = scmp.ne.s32.totalorder %s352, %s353
      %p365 = scmp.eq.s32.totalorder %s39, 1
      %p366 = por %p364, %p365
      %p368 = scmp.ne.s32.totalorder %s353, %s367
      %p369 = scmp.eq.s32.totalorder %s39, 0
      %p370 = por %p368, %p369
      %s371 = ssub.s32 %s40, %s52
      %s372 = ssub.s32 %s41, %s48
      %s373 = sor.u32 %s371, %s372
      %p374 = scmp.eq.s32.totalorder %s373, 0
      %s376 = sadd.s32 %s375, 1
      %s377 = scalar_select %p374, %s375, %s376
      %p380 = pneg %p374
      %p381 = scmp.eq.s32.totalorder %s33, 1
      %p382 = por %p380, %p381
      %p383 = scmp.ne.s32.totalorder %s375, %s378
      %p384 = scmp.eq.s32.totalorder %s33, 0
      %p385 = por %p383, %p384
      %p386 = scmp.ne.s32.totalorder %s375, %s378
      %p387 = scmp.eq.s32.totalorder %s38, 1
      %p388 = por %p386, %p387
      %p389 = scmp.ne.s32.totalorder %s378, %s379
      %p390 = scmp.eq.s32.totalorder %s38, 0
      %p391 = por %p389, %p390
      %p392 = scmp.ne.s32.totalorder %s378, %s379
      %p393 = scmp.eq.s32.totalorder %s39, 1
      %p394 = por %p392, %p393
      %p396 = scmp.ne.s32.totalorder %s379, %s395
      %p397 = scmp.eq.s32.totalorder %s39, 0
      %p398 = por %p396, %p397
      %p399 = scmp.le.s32.totalorder 1, %s33
      %p400 = scmp.lt.s32.totalorder %s33, 3
      %p401 = pnand %p399, %p400
      %p402 = pneg %p401
      // Predicated region
      $region9: #{tpu_custom_call.1} parent=5 // pred_check
        _
      $region10: #{tpu_custom_call.1} parent=5 // pred_check_branch
        %404 = sbr.rel (%p401) target = $region12
      $region11: #{tpu_custom_call.1} parent=5 // pred_region
        %s405 = ssub.s32 %s33, 1
        // Predicated region
        $region13: #{tpu_custom_call.1} parent=11 // pred_check
          %p406 = pneg %p174
        $region14: #{tpu_custom_call.1} parent=11 // pred_check_branch
          %408 = sbr.rel (%p406) target = $region16
        $region15: #{tpu_custom_call.1} parent=11 // pred_region
          %s410 = ssub.s32 512, 512
          %411 = vsyncadd [#allocation9], %s410
          %s412 = sshll.u32 [#allocation10], 4
          %s413 = int_to_ptr.vmem [resolvable:$true] %s412
          %418 = dma.hbm_to_vmem [thread:$0]  %s4, 512, %s413, [#allocation9], 128, 128, 8
        $region16: #{tpu_custom_call.1} parent=11 // pred_fallthru
          _
        // Predicated region
        $region17: #{tpu_custom_call.1} parent=11 // pred_check
          %p419 = pneg %p195
        $region18: #{tpu_custom_call.1} parent=11 // pred_check_branch
          %421 = sbr.rel (%p419) target = $region20
        $region19: #{tpu_custom_call.1} parent=11 // pred_region
          _
        $region20: #{tpu_custom_call.1} parent=11 // pred_fallthru
          _
        // Predicated region
        $region21: #{tpu_custom_call.1} parent=11 // pred_check
          %p422 = pneg %p216
        $region22: #{tpu_custom_call.1} parent=11 // pred_check_branch
          %424 = sbr.rel (%p422) target = $region24
        $region23: #{tpu_custom_call.1} parent=11 // pred_region
          %s426 = ssub.s32 512, 512
          %427 = vsyncadd [#allocation12], %s426
          %s428 = sshll.u32 [#allocation11], 4
          %s429 = int_to_ptr.vmem [resolvable:$true] %s428
          %434 = dma.hbm_to_vmem [thread:$0]  %s6, 512, %s429, [#allocation12], 128, 128, 8
        $region24: #{tpu_custom_call.1} parent=11 // pred_fallthru
          _
        // Predicated region
        $region25: #{tpu_custom_call.1} parent=11 // pred_check
          %p435 = pneg %p237
        $region26: #{tpu_custom_call.1} parent=11 // pred_check_branch
          %437 = sbr.rel (%p435) target = $region28
        $region27: #{tpu_custom_call.1} parent=11 // pred_region
          _
        $region28: #{tpu_custom_call.1} parent=11 // pred_fallthru
          _
        // Predicated region
        $region29: #{tpu_custom_call.1} parent=11 // pred_check
          %p438 = pneg %p258
        $region30: #{tpu_custom_call.1} parent=11 // pred_check_branch
          %440 = sbr.rel (%p438) target = $region32
        $region31: #{tpu_custom_call.1} parent=11 // pred_region
          %s442 = ssub.s32 512, 512
          %443 = vsyncadd [#allocation12], %s442
          %s444 = sshll.u32 [#allocation13], 4
          %s445 = int_to_ptr.vmem [resolvable:$true] %s444
          %450 = dma.hbm_to_vmem [thread:$0]  %s8, 512, %s445, [#allocation12], 128, 128, 8
        $region32: #{tpu_custom_call.1} parent=11 // pred_fallthru
          _
        // Predicated region
        $region33: #{tpu_custom_call.1} parent=11 // pred_check
          %p451 = pneg %p279
        $region34: #{tpu_custom_call.1} parent=11 // pred_check_branch
          %453 = sbr.rel (%p451) target = $region36
        $region35: #{tpu_custom_call.1} parent=11 // pred_region
          _
        $region36: #{tpu_custom_call.1} parent=11 // pred_fallthru
          _
        // Predicated region
        $region37: #{tpu_custom_call.1} parent=11 // pred_check
          %p454 = pneg %p300
        $region38: #{tpu_custom_call.1} parent=11 // pred_check_branch
          %456 = sbr.rel (%p454) target = $region40
        $region39: #{tpu_custom_call.1} parent=11 // pred_region
          _
        $region40: #{tpu_custom_call.1} parent=11 // pred_fallthru
          _
        // Predicated region
        $region41: #{tpu_custom_call.1} parent=11 // pred_check
          %p457 = pneg %p321
        $region42: #{tpu_custom_call.1} parent=11 // pred_check_branch
          %459 = sbr.rel (%p457) target = $region44
        $region43: #{tpu_custom_call.1} parent=11 // pred_region
          _
        $region44: #{tpu_custom_call.1} parent=11 // pred_fallthru
          _
        // Predicated region
        $region45: #{tpu_custom_call.1} parent=11 // pred_check
          %p460 = pneg %p342
        $region46: #{tpu_custom_call.1} parent=11 // pred_check_branch
          %462 = sbr.rel (%p460) target = $region48
        $region47: #{tpu_custom_call.1} parent=11 // pred_region
          _
        $region48: #{tpu_custom_call.1} parent=11 // pred_fallthru
          _
        // Predicated region
        $region49: #{tpu_custom_call.1} parent=11 // pred_check
          %p463 = pneg %p363
        $region50: #{tpu_custom_call.1} parent=11 // pred_check_branch
          %465 = sbr.rel (%p463) target = $region52
        $region51: #{tpu_custom_call.1} parent=11 // pred_region
          _
        $region52: #{tpu_custom_call.1} parent=11 // pred_fallthru
          _
      $region12: #{tpu_custom_call.1} parent=5 // pred_fallthru
        _
      %p466 = scmp.lt.s32.totalorder %s33, 2
      // Predicated region
      $region53: #{tpu_custom_call.1} parent=5 // pred_check
        %p467 = pneg %p466
      $region54: #{tpu_custom_call.1} parent=5 // pred_check_branch
        %469 = sbr.rel (%p467) target = $region56
      $region55: #{tpu_custom_call.1} parent=5 // pred_region
        // Predicated region
        $region57: #{tpu_custom_call.1} parent=55 // pred_check
          %p470 = pneg %p67
        $region58: #{tpu_custom_call.1} parent=55 // pred_check_branch
          %472 = sbr.rel (%p470) target = $region60
        $region59: #{tpu_custom_call.1} parent=55 // pred_region
          %s473 = sand.u32 %s57, 1
          %s474 = scalar_lea.sflag [#allocation3], %s473
          %s475 = sand.u32 %s57, 1
          %s476 = smul.addr %s475, 8
          %s477 = scalar_lea.vmem [#allocation2], %s476
          %s479 = ssub.s32 128, 128
          %480 = vsyncadd %s474, %s479
          %s481 = sadd.s32 %s41, %s40
          %s482 = smul.addr %s481, 128
          %s483 = scalar_lea.hbm %s0, %s482
          %s485 = sshll.u32 %s477, 4
          %s486 = int_to_ptr.vmem [resolvable:$true] %s485
          %488 = dma.hbm_to_vmem [thread:$0]  %s483, 128, %s486, %s474
        $region60: #{tpu_custom_call.1} parent=55 // pred_fallthru
          _
        // Predicated region
        $region61: #{tpu_custom_call.1} parent=55 // pred_check
          %p489 = pneg %p95
        $region62: #{tpu_custom_call.1} parent=55 // pred_check_branch
          %491 = sbr.rel (%p489) target = $region64
        $region63: #{tpu_custom_call.1} parent=55 // pred_region
          %s492 = sand.u32 %s33, 1
          %s493 = scalar_lea.sflag [#allocation6], %s492
          %s494 = sand.u32 %s85, 1
          %s495 = smul.addr %s494, 8
          %s496 = scalar_lea.vmem [#allocation5], %s495
          %s498 = ssub.s32 128, 128
          %499 = vsyncadd %s493, %s498
          %s500 = sadd.s32 %s41, %s40
          %s501 = smul.addr %s500, 128
          %s502 = scalar_lea.hbm %s1, %s501
          %s504 = sshll.u32 %s496, 4
          %s505 = int_to_ptr.vmem [resolvable:$true] %s504
          %507 = dma.hbm_to_vmem [thread:$0]  %s502, 128, %s505, %s493
        $region64: #{tpu_custom_call.1} parent=55 // pred_fallthru
          _
        // Predicated region
        $region65: #{tpu_custom_call.1} parent=55 // pred_check
          %p508 = pneg %p121
        $region66: #{tpu_custom_call.1} parent=55 // pred_check_branch
          %510 = sbr.rel (%p508) target = $region68
        $region67: #{tpu_custom_call.1} parent=55 // pred_region
          %s511 = sand.u32 %s33, 1
          %s512 = scalar_lea.sflag [#allocation6], %s511
          %s513 = sand.u32 %s111, 1
          %s514 = smul.addr %s513, 32
          %s515 = scalar_lea.vmem [#allocation7], %s514
          %s517 = ssub.s32 512, 512
          %518 = vsyncadd %s512, %s517
          %s519 = smul.addr %s40, 4
          %s520 = smul.addr %s519, 128
          %s521 = scalar_lea.hbm %s2, %s520
          %s522 = sshll.u32 %s515, 4
          %s523 = int_to_ptr.vmem [resolvable:$true] %s522
          %528 = dma.hbm_to_vmem [thread:$0]  %s521, 512, %s523, %s512, 128, 128, 8
        $region68: #{tpu_custom_call.1} parent=55 // pred_fallthru
          _
        // Predicated region
        $region69: #{tpu_custom_call.1} parent=55 // pred_check
          %p529 = pneg %p147
        $region70: #{tpu_custom_call.1} parent=55 // pred_check_branch
          %531 = sbr.rel (%p529) target = $region72
        $region71: #{tpu_custom_call.1} parent=55 // pred_region
          %s532 = sand.u32 %s33, 1
          %s533 = scalar_lea.sflag [#allocation9], %s532
          %s534 = sand.u32 %s137, 1
          %s535 = smul.addr %s534, 32
          %s536 = scalar_lea.vmem [#allocation8], %s535
          %s538 = ssub.s32 512, 512
          %539 = vsyncadd %s533, %s538
          %s540 = smul.addr %s40, 4
          %s541 = smul.addr %s540, 128
          %s542 = scalar_lea.hbm %s3, %s541
          %s543 = sshll.u32 %s536, 4
          %s544 = int_to_ptr.vmem [resolvable:$true] %s543
          %549 = dma.hbm_to_vmem [thread:$0]  %s542, 512, %s544, %s533, 128, 128, 8
        $region72: #{tpu_custom_call.1} parent=55 // pred_fallthru
          _
      $region56: #{tpu_custom_call.1} parent=5 // pred_fallthru
        _
      %p550 = scmp.le.s32.totalorder 1, %s33
      %p551 = scmp.lt.s32.totalorder %s33, 3
      %p552 = pnand %p550, %p551
      %p553 = pneg %p552
      // Predicated region
      $region73: #{tpu_custom_call.1} parent=5 // pred_check
        _
      $region74: #{tpu_custom_call.1} parent=5 // pred_check_branch
        %555 = sbr.rel (%p552) target = $region76
      $region75: #{tpu_custom_call.1} parent=5 // pred_region
        %s556 = ssub.s32 %s33, 1
        %s557 = sand.u32 %s60, 1
        %s558 = scalar_lea.sflag [#allocation3], %s557
        %s559 = sand.u32 %s60, 1
        %s560 = smul.addr %s559, 8
        %s561 = scalar_lea.vmem [#allocation2], %s560
        // Predicated region
        $region77: #{tpu_custom_call.1} parent=75 // pred_check
          %p562 = pneg %p73
        $region78: #{tpu_custom_call.1} parent=75 // pred_check_branch
          %564 = sbr.rel (%p562) target = $region80
        $region79: #{tpu_custom_call.1} parent=75 // pred_region
          %565 = dma.done %s558, 128
        $region80: #{tpu_custom_call.1} parent=75 // pred_fallthru
          _
        %s566 = sand.u32 %s38, 1
        %s567 = scalar_lea.sflag [#allocation6], %s566
        %s568 = sand.u32 %s88, 1
        %s569 = smul.addr %s568, 8
        %s570 = scalar_lea.vmem [#allocation5], %s569
        // Predicated region
        $region81: #{tpu_custom_call.1} parent=75 // pred_check
          %p571 = pneg %p101
        $region82: #{tpu_custom_call.1} parent=75 // pred_check_branch
          %573 = sbr.rel (%p571) target = $region84
        $region83: #{tpu_custom_call.1} parent=75 // pred_region
          %574 = dma.done %s567, 128
        $region84: #{tpu_custom_call.1} parent=75 // pred_fallthru
          _
        %s575 = sand.u32 %s38, 1
        %s576 = scalar_lea.sflag [#allocation6], %s575
        %s577 = sand.u32 %s114, 1
        %s578 = smul.addr %s577, 32
        %s579 = scalar_lea.vmem [#allocation7], %s578
        // Predicated region
        $region85: #{tpu_custom_call.1} parent=75 // pred_check
          %p580 = pneg %p127
        $region86: #{tpu_custom_call.1} parent=75 // pred_check_branch
          %582 = sbr.rel (%p580) target = $region88
        $region87: #{tpu_custom_call.1} parent=75 // pred_region
          %583 = dma.done %s576, 512
        $region88: #{tpu_custom_call.1} parent=75 // pred_fallthru
          _
        %s584 = sand.u32 %s38, 1
        %s585 = scalar_lea.sflag [#allocation9], %s584
        %s586 = sand.u32 %s140, 1
        %s587 = smul.addr %s586, 32
        %s588 = scalar_lea.vmem [#allocation8], %s587
        // Predicated region
        $region89: #{tpu_custom_call.1} parent=75 // pred_check
          %p589 = pneg %p153
        $region90: #{tpu_custom_call.1} parent=75 // pred_check_branch
          %591 = sbr.rel (%p589) target = $region92
        $region91: #{tpu_custom_call.1} parent=75 // pred_region
          %592 = dma.done %s585, 512
        $region92: #{tpu_custom_call.1} parent=75 // pred_fallthru
          _
        // Predicated region
        $region93: #{tpu_custom_call.1} parent=75 // pred_check
          %p593 = pneg %p174
        $region94: #{tpu_custom_call.1} parent=75 // pred_check_branch
          %595 = sbr.rel (%p593) target = $region96
        $region95: #{tpu_custom_call.1} parent=75 // pred_region
          %596 = dma.done [#allocation9], 512
        $region96: #{tpu_custom_call.1} parent=75 // pred_fallthru
          _
        // Predicated region
        $region97: #{tpu_custom_call.1} parent=75 // pred_check
          %p597 = pneg %p216
        $region98: #{tpu_custom_call.1} parent=75 // pred_check_branch
          %599 = sbr.rel (%p597) target = $region100
        $region99: #{tpu_custom_call.1} parent=75 // pred_region
          %600 = dma.done [#allocation12], 512
        $region100: #{tpu_custom_call.1} parent=75 // pred_fallthru
          _
        // Predicated region
        $region101: #{tpu_custom_call.1} parent=75 // pred_check
          %p601 = pneg %p258
        $region102: #{tpu_custom_call.1} parent=75 // pred_check_branch
          %603 = sbr.rel (%p601) target = $region104
        $region103: #{tpu_custom_call.1} parent=75 // pred_region
          %604 = dma.done [#allocation12], 512
        $region104: #{tpu_custom_call.1} parent=75 // pred_fallthru
          _
        %s605 = sand.u32 %s60, 1
        %s606 = scalar_lea.sflag [#allocation3], %s605
        %s607 = sand.u32 %s60, 1
        %s608 = smul.addr %s607, 8
        %s609 = scalar_lea.vmem [#allocation2], %s608
        %p610 = pneg %p73
        %p611 = pneg %p70
        %s612 = sand.u32 %s38, 1
        %s613 = scalar_lea.sflag [#allocation6], %s612
        %s614 = sand.u32 %s88, 1
        %s615 = smul.addr %s614, 8
        %s616 = scalar_lea.vmem [#allocation5], %s615
        %p617 = pneg %p101
        %p618 = pneg %p98
        %s619 = sand.u32 %s38, 1
        %s620 = scalar_lea.sflag [#allocation6], %s619
        %s621 = sand.u32 %s114, 1
        %s622 = smul.addr %s621, 32
        %s623 = scalar_lea.vmem [#allocation7], %s622
        %p624 = pneg %p127
        %p625 = pneg %p124
        %s626 = sand.u32 %s38, 1
        %s627 = scalar_lea.sflag [#allocation9], %s626
        %s628 = sand.u32 %s140, 1
        %s629 = smul.addr %s628, 32
        %s630 = scalar_lea.vmem [#allocation8], %s629
        %p631 = pneg %p153
        %p632 = pneg %p150
        %p633 = pneg %p174
        %p634 = pneg %p171
        %p635 = pneg %p195
        %p636 = pneg %p192
        %p637 = pneg %p216
        %p638 = pneg %p213
        %p639 = pneg %p237
        %p640 = pneg %p234
        %p641 = pneg %p258
        %p642 = pneg %p255
        %p643 = pneg %p279
        %p644 = pneg %p276
        %p645 = pneg %p300
        %p646 = pneg %p297
        %p647 = pneg %p321
        %p648 = pneg %p318
        %p649 = pneg %p342
        %p650 = pneg %p339
        %p651 = pneg %p363
        %p652 = pneg %p360
        %p653 = pneg %p391
        %p654 = pneg %p388
        %s655 = sand.u32 %s378, 1
        %s656 = scalar_lea.sflag [#allocation4], %s655
        %s657 = sand.u32 %s378, 1
        %s658 = smul.addr %s657, 8
        %s659 = scalar_lea.vmem [#allocation14], %s658
        %v660 = vld [vmem:[%s570] sm:$0xff]
        %v661 = vld [vmem:[%s579] sm:$0xff]
        %v662 = vld [vmem:[%s579 + $0x8] sm:$0xff]
        %v663 = vld [vmem:[%s579 + $0x10] sm:$0xff]
        %v664 = vld [vmem:[%s579 + $0x18] sm:$0xff]
        %v665 = vld [vmem:[%s588] sm:$0xff]
        %v666 = vld [vmem:[%s588 + $0x8] sm:$0xff]
        %v667 = vld [vmem:[%s588 + $0x10] sm:$0xff]
        %v668 = vld [vmem:[%s588 + $0x18] sm:$0xff]
        %v669 = vld [vmem:[#allocation10] sm:$0xff]
        %v670 = vld [vmem:[#allocation10 + $0x8] sm:$0xff]
        %v671 = vld [vmem:[#allocation10 + $0x10] sm:$0xff]
        %v672 = vld [vmem:[#allocation10 + $0x18] sm:$0xff]
        %v673 = vld [vmem:[%s5] sm:$0x1]
        %v675 = vlaneseq
        %v676 = vshrl.u32 %v675, 7
        %v677 = vsub.s32 0, %v676
        %v678 = vrot.slane %v673, %v677
        %vm680 = vcmask 261120
        %v682 = vsel %vm680, %v660, 0
        %684 = vmatprep.subr.mxu0 0.0
        %685 = vmatpush1.msra.mxu0 %v669
        %686 = vmatprep.subr.mxu0 0.0
        %687 = vmatpush1.msra.mxu0 %v670
        %688 = vmatprep.subr.mxu0 0.0
        %689 = vmatpush1.msra.mxu0 %v671
        %690 = vmatprep.subr.mxu0 0.0
        %691 = vmatpush1.msra.mxu0 %v672
        %692 = vmatprep.subr.mxu0 0.0
        %693 = vmatpush1.msra.mxu0 0.0
        %694 = vmatprep.subr.mxu0 0.0
        %695 = vmatpush1.msra.mxu0 0.0
        %696 = vmatprep.subr.mxu0 0.0
        %697 = vmatpush1.msra.mxu0 0.0
        %698 = vmatprep.subr.mxu0 0.0
        %699 = vmatpush1.msra.mxu0 0.0
        %700 = vmatprep.subr.mxu0 0.0
        %701 = vmatpush1.msra.mxu0 0.0
        %702 = vmatprep.subr.mxu0 0.0
        %703 = vmatpush1.msra.mxu0 0.0
        %704 = vmatprep.subr.mxu0 0.0
        %705 = vmatpush1.msra.mxu0 0.0
        %706 = vmatprep.subr.mxu0 0.0
        %707 = vmatpush1.msra.mxu0 0.0
        %708 = vmatprep.subr.mxu0 0.0
        %709 = vmatpush1.msra.mxu0 0.0
        %710 = vmatprep.subr.mxu0 0.0
        %711 = vmatpush1.msra.mxu0 0.0
        %712 = vmatprep.subr.mxu0 0.0
        %713 = vmatpush1.msra.mxu0 0.0
        %714 = vmatprep.subr.mxu0 0.0
        %715 = vmatpush1.msra.mxu0 0.0
        %716 = vmatprep.subr.mxu0 0.0
        %717 = vmatpush1.msra.mxu0 0.0
        %718 = vmatprep.subr.mxu0 0.0
        %719 = vmatpush1.msra.mxu0 0.0
        %720 = vmatprep.subr.mxu0 0.0
        %721 = vmatpush1.msra.mxu0 0.0
        %722 = vmatprep.subr.mxu0 0.0
        %723 = vmatpush1.msra.mxu0 0.0
        %724 = vmatprep.subr.mxu0 0.0
        %725 = vmatpush1.msra.mxu0 0.0
        %726 = vmatprep.subr.mxu0 0.0
        %727 = vmatpush1.msra.mxu0 0.0
        %728 = vmatprep.subr.mxu0 0.0
        %729 = vmatpush1.msra.mxu0 0.0
        %730 = vmatprep.subr.mxu0 0.0
        %731 = vmatpush1.msra.mxu0 0.0
        %732 = vmatprep.subr.mxu0 0.0
        %733 = vmatpush1.msra.mxu0 0.0
        %734 = vmatprep.subr.mxu0 0.0
        %735 = vmatpush1.msra.mxu0 0.0
        %736 = vmatprep.subr.mxu0 0.0
        %737 = vmatpush1.msra.mxu0 0.0
        %738 = vmatprep.subr.mxu0 0.0
        %739 = vmatpush1.msra.mxu0 0.0
        %740 = vmatprep.subr.mxu0 0.0
        %741 = vmatpush1.msra.mxu0 0.0
        %742 = vmatprep.subr.mxu0 0.0
        %743 = vmatpush1.msra.mxu0 0.0
        %744 = vmatprep.subr.mxu0 0.0
        %745 = vmatpush1.msra.mxu0 0.0
        %746 = vmatprep.subr.mxu0 0.0
        %747 = vmatpush1.msra.mxu0 0.0
        %748 = vmatprep.mubr.f32.mxu0 0.0
        %749 = vmatmul.mubr.f32.gmra.mrb[0].mxu0 %v682
        %v750 = vpop.f32.mrb[0].mxu0
        %v751 = vadd.f32 %v678, %v750
        %v752 = vpop.f32.mrb[0].mxu0
        %753 = vdwg.mxu0
        %v754 = vmul.f32 %v751, 0.35355338
        %v755 = vld [vmem:[#allocation11] sm:$0xff]
        %v756 = vld [vmem:[#allocation11 + $0x8] sm:$0xff]
        %v757 = vld [vmem:[#allocation11 + $0x10] sm:$0xff]
        %v758 = vld [vmem:[#allocation11 + $0x18] sm:$0xff]
        %v759 = vld [vmem:[%s7] sm:$0x1]
        %v761 = vlaneseq
        %v762 = vshrl.u32 %v761, 7
        %v763 = vsub.s32 0, %v762
        %v764 = vrot.slane %v759, %v763
        %v767 = vsel %vm680, %v661, 0
        %v770 = vsel %vm680, %v662, 0
        %v773 = vsel %vm680, %v663, 0
        %v776 = vsel %vm680, %v664, 0
        %778 = vmatprep.subr.mxu0 0.0
        %779 = vmatpush1.msra.mxu0 %v755
        %780 = vmatprep.subr.mxu0 0.0
        %781 = vmatpush1.msra.mxu0 %v756
        %782 = vmatprep.subr.mxu0 0.0
        %783 = vmatpush1.msra.mxu0 %v757
        %784 = vmatprep.subr.mxu0 0.0
        %785 = vmatpush1.msra.mxu0 %v758
        %786 = vmatprep.subr.mxu0 0.0
        %787 = vmatpush1.msra.mxu0 0.0
        %788 = vmatprep.subr.mxu0 0.0
        %789 = vmatpush1.msra.mxu0 0.0
        %790 = vmatprep.subr.mxu0 0.0
        %791 = vmatpush1.msra.mxu0 0.0
        %792 = vmatprep.subr.mxu0 0.0
        %793 = vmatpush1.msra.mxu0 0.0
        %794 = vmatprep.subr.mxu0 0.0
        %795 = vmatpush1.msra.mxu0 0.0
        %796 = vmatprep.subr.mxu0 0.0
        %797 = vmatpush1.msra.mxu0 0.0
        %798 = vmatprep.subr.mxu0 0.0
        %799 = vmatpush1.msra.mxu0 0.0
        %800 = vmatprep.subr.mxu0 0.0
        %801 = vmatpush1.msra.mxu0 0.0
        %802 = vmatprep.subr.mxu0 0.0
        %803 = vmatpush1.msra.mxu0 0.0
        %804 = vmatprep.subr.mxu0 0.0
        %805 = vmatpush1.msra.mxu0 0.0
        %806 = vmatprep.subr.mxu0 0.0
        %807 = vmatpush1.msra.mxu0 0.0
        %808 = vmatprep.subr.mxu0 0.0
        %809 = vmatpush1.msra.mxu0 0.0
        %810 = vmatprep.subr.mxu0 0.0
        %811 = vmatpush1.msra.mxu0 0.0
        %812 = vmatprep.subr.mxu0 0.0
        %813 = vmatpush1.msra.mxu0 0.0
        %814 = vmatprep.subr.mxu0 0.0
        %815 = vmatpush1.msra.mxu0 0.0
        %816 = vmatprep.subr.mxu0 0.0
        %817 = vmatpush1.msra.mxu0 0.0
        %818 = vmatprep.subr.mxu0 0.0
        %819 = vmatpush1.msra.mxu0 0.0
        %820 = vmatprep.subr.mxu0 0.0
        %821 = vmatpush1.msra.mxu0 0.0
        %822 = vmatprep.subr.mxu0 0.0
        %823 = vmatpush1.msra.mxu0 0.0
        %824 = vmatprep.subr.mxu0 0.0
        %825 = vmatpush1.msra.mxu0 0.0
        %826 = vmatprep.subr.mxu0 0.0
        %827 = vmatpush1.msra.mxu0 0.0
        %828 = vmatprep.subr.mxu0 0.0
        %829 = vmatpush1.msra.mxu0 0.0
        %830 = vmatprep.subr.mxu0 0.0
        %831 = vmatpush1.msra.mxu0 0.0
        %832 = vmatprep.subr.mxu0 0.0
        %833 = vmatpush1.msra.mxu0 0.0
        %834 = vmatprep.subr.mxu0 0.0
        %835 = vmatpush1.msra.mxu0 0.0
        %836 = vmatprep.subr.mxu0 0.0
        %837 = vmatpush1.msra.mxu0 0.0
        %838 = vmatprep.subr.mxu0 0.0
        %839 = vmatpush1.msra.mxu0 0.0
        %840 = vmatprep.subr.mxu0 0.0
        %841 = vmatpush1.msra.mxu0 0.0
        %842 = vmatprep.mubr.f32.mxu0 0.0
        %843 = vmatmul.mubr.f32.gmra.mrb[0].mxu0 %v767
        %v844 = vpop.f32.mrb[0].mxu0
        %v845 = vadd.f32 %v764, %v844
        %v846 = vpop.f32.mrb[0].mxu0
        %847 = vmatprep.mubr.f32.mxu0 0.0
        %848 = vmatmul.mubr.f32.gmra.mrb[0].mxu0 %v770
        %v849 = vpop.f32.mrb[0].mxu0
        %v850 = vadd.f32 %v764, %v849
        %v851 = vpop.f32.mrb[0].mxu0
        %852 = vmatprep.mubr.f32.mxu0 0.0
        %853 = vmatmul.mubr.f32.gmra.mrb[0].mxu0 %v773
        %v854 = vpop.f32.mrb[0].mxu0
        %v855 = vadd.f32 %v764, %v854
        %v856 = vpop.f32.mrb[0].mxu0
        %857 = vmatprep.mubr.f32.mxu0 0.0
        %858 = vmatmul.mubr.f32.gmra.mrb[0].mxu0 %v776
        %v859 = vpop.f32.mrb[0].mxu0
        %v860 = vadd.f32 %v764, %v859
        %v861 = vpop.f32.mrb[0].mxu0
        %862 = vdwg.mxu0
        %v863 = vld [vmem:[#allocation13] sm:$0xff]
        %v864 = vld [vmem:[#allocation13 + $0x8] sm:$0xff]
        %v865 = vld [vmem:[#allocation13 + $0x10] sm:$0xff]
        %v866 = vld [vmem:[#allocation13 + $0x18] sm:$0xff]
        %v867 = vld [vmem:[%s9] sm:$0x1]
        %v869 = vlaneseq
        %v870 = vshrl.u32 %v869, 7
        %v871 = vsub.s32 0, %v870
        %v872 = vrot.slane %v867, %v871
        %v875 = vsel %vm680, %v665, 0
        %v878 = vsel %vm680, %v666, 0
        %v881 = vsel %vm680, %v667, 0
        %v884 = vsel %vm680, %v668, 0
        %886 = vmatprep.subr.mxu0 0.0
        %887 = vmatpush1.msra.mxu0 %v863
        %888 = vmatprep.subr.mxu0 0.0
        %889 = vmatpush1.msra.mxu0 %v864
        %890 = vmatprep.subr.mxu0 0.0
        %891 = vmatpush1.msra.mxu0 %v865
        %892 = vmatprep.subr.mxu0 0.0
        %893 = vmatpush1.msra.mxu0 %v866
        %894 = vmatprep.subr.mxu0 0.0
        %895 = vmatpush1.msra.mxu0 0.0
        %896 = vmatprep.subr.mxu0 0.0
        %897 = vmatpush1.msra.mxu0 0.0
        %898 = vmatprep.subr.mxu0 0.0
        %899 = vmatpush1.msra.mxu0 0.0
        %900 = vmatprep.subr.mxu0 0.0
        %901 = vmatpush1.msra.mxu0 0.0
        %902 = vmatprep.subr.mxu0 0.0
        %903 = vmatpush1.msra.mxu0 0.0
        %904 = vmatprep.subr.mxu0 0.0
        %905 = vmatpush1.msra.mxu0 0.0
        %906 = vmatprep.subr.mxu0 0.0
        %907 = vmatpush1.msra.mxu0 0.0
        %908 = vmatprep.subr.mxu0 0.0
        %909 = vmatpush1.msra.mxu0 0.0
        %910 = vmatprep.subr.mxu0 0.0
        %911 = vmatpush1.msra.mxu0 0.0
        %912 = vmatprep.subr.mxu0 0.0
        %913 = vmatpush1.msra.mxu0 0.0
        %914 = vmatprep.subr.mxu0 0.0
        %915 = vmatpush1.msra.mxu0 0.0
        %916 = vmatprep.subr.mxu0 0.0
        %917 = vmatpush1.msra.mxu0 0.0
        %918 = vmatprep.subr.mxu0 0.0
        %919 = vmatpush1.msra.mxu0 0.0
        %920 = vmatprep.subr.mxu0 0.0
        %921 = vmatpush1.msra.mxu0 0.0
        %922 = vmatprep.subr.mxu0 0.0
        %923 = vmatpush1.msra.mxu0 0.0
        %924 = vmatprep.subr.mxu0 0.0
        %925 = vmatpush1.msra.mxu0 0.0
        %926 = vmatprep.subr.mxu0 0.0
        %927 = vmatpush1.msra.mxu0 0.0
        %928 = vmatprep.subr.mxu0 0.0
        %929 = vmatpush1.msra.mxu0 0.0
        %930 = vmatprep.subr.mxu0 0.0
        %931 = vmatpush1.msra.mxu0 0.0
        %932 = vmatprep.subr.mxu0 0.0
        %933 = vmatpush1.msra.mxu0 0.0
        %934 = vmatprep.subr.mxu0 0.0
        %935 = vmatpush1.msra.mxu0 0.0
        %936 = vmatprep.subr.mxu0 0.0
        %937 = vmatpush1.msra.mxu0 0.0
        %938 = vmatprep.subr.mxu0 0.0
        %939 = vmatpush1.msra.mxu0 0.0
        %940 = vmatprep.subr.mxu0 0.0
        %941 = vmatpush1.msra.mxu0 0.0
        %942 = vmatprep.subr.mxu0 0.0
        %943 = vmatpush1.msra.mxu0 0.0
        %944 = vmatprep.subr.mxu0 0.0
        %945 = vmatpush1.msra.mxu0 0.0
        %946 = vmatprep.subr.mxu0 0.0
        %947 = vmatpush1.msra.mxu0 0.0
        %948 = vmatprep.subr.mxu0 0.0
        %949 = vmatpush1.msra.mxu0 0.0
        %950 = vmatprep.mubr.f32.mxu0 0.0
        %951 = vmatmul.mubr.f32.gmra.mrb[0].mxu0 %v875
        %v952 = vpop.f32.mrb[0].mxu0
        %v953 = vadd.f32 %v872, %v952
        %v954 = vpop.f32.mrb[0].mxu0
        %955 = vmatprep.mubr.f32.mxu0 0.0
        %956 = vmatmul.mubr.f32.gmra.mrb[0].mxu0 %v878
        %v957 = vpop.f32.mrb[0].mxu0
        %v958 = vadd.f32 %v872, %v957
        %v959 = vpop.f32.mrb[0].mxu0
        %960 = vmatprep.mubr.f32.mxu0 0.0
        %961 = vmatmul.mubr.f32.gmra.mrb[0].mxu0 %v881
        %v962 = vpop.f32.mrb[0].mxu0
        %v963 = vadd.f32 %v872, %v962
        %v964 = vpop.f32.mrb[0].mxu0
        %965 = vmatprep.mubr.f32.mxu0 0.0
        %966 = vmatmul.mubr.f32.gmra.mrb[0].mxu0 %v884
        %v967 = vpop.f32.mrb[0].mxu0
        %v968 = vadd.f32 %v872, %v967
        %v969 = vpop.f32.mrb[0].mxu0
        %970 = vdwg.mxu0
        %vm971 = vcmask 64512
        %v973 = vsel %vm971, %v754, 0
        %v976 = vsel %vm971, %v845, 0
        %v979 = vsel %vm971, %v850, 0
        %v982 = vsel %vm971, %v855, 0
        %v985 = vsel %vm971, %v860, 0
        %987 = vmatprep.subr.mxu0 0.0
        %988 = vmatpush1.xpose.msra.mxu0 %v976
        %989 = vmatprep.subr.mxu0 0.0
        %990 = vmatpush1.xpose.msra.mxu0 %v979
        %991 = vmatprep.subr.mxu0 0.0
        %992 = vmatpush1.xpose.msra.mxu0 %v982
        %993 = vmatprep.subr.mxu0 0.0
        %994 = vmatpush1.xpose.msra.mxu0 %v985
        %995 = vmatprep.subr.mxu0 0.0
        %996 = vmatpush1.xpose.msra.mxu0 0.0
        %997 = vmatprep.subr.mxu0 0.0
        %998 = vmatpush1.xpose.msra.mxu0 0.0
        %999 = vmatprep.subr.mxu0 0.0
        %1000 = vmatpush1.xpose.msra.mxu0 0.0
        %1001 = vmatprep.subr.mxu0 0.0
        %1002 = vmatpush1.xpose.msra.mxu0 0.0
        %1003 = vmatprep.subr.mxu0 0.0
        %1004 = vmatpush1.xpose.msra.mxu0 0.0
        %1005 = vmatprep.subr.mxu0 0.0
        %1006 = vmatpush1.xpose.msra.mxu0 0.0
        %1007 = vmatprep.subr.mxu0 0.0
        %1008 = vmatpush1.xpose.msra.mxu0 0.0
        %1009 = vmatprep.subr.mxu0 0.0
        %1010 = vmatpush1.xpose.msra.mxu0 0.0
        %1011 = vmatprep.subr.mxu0 0.0
        %1012 = vmatpush1.xpose.msra.mxu0 0.0
        %1013 = vmatprep.subr.mxu0 0.0
        %1014 = vmatpush1.xpose.msra.mxu0 0.0
        %1015 = vmatprep.subr.mxu0 0.0
        %1016 = vmatpush1.xpose.msra.mxu0 0.0
        %1017 = vmatprep.subr.mxu0 0.0
        %1018 = vmatpush1.xpose.msra.mxu0 0.0
        %1019 = vmatprep.subr.mxu0 0.0
        %1020 = vmatpush1.xpose.msra.mxu0 0.0
        %1021 = vmatprep.subr.mxu0 0.0
        %1022 = vmatpush1.xpose.msra.mxu0 0.0
        %1023 = vmatprep.subr.mxu0 0.0
        %1024 = vmatpush1.xpose.msra.mxu0 0.0
        %1025 = vmatprep.subr.mxu0 0.0
        %1026 = vmatpush1.xpose.msra.mxu0 0.0
        %1027 = vmatprep.subr.mxu0 0.0
        %1028 = vmatpush1.xpose.msra.mxu0 0.0
        %1029 = vmatprep.subr.mxu0 0.0
        %1030 = vmatpush1.xpose.msra.mxu0 0.0
        %1031 = vmatprep.subr.mxu0 0.0
        %1032 = vmatpush1.xpose.msra.mxu0 0.0
        %1033 = vmatprep.subr.mxu0 0.0
        %1034 = vmatpush1.xpose.msra.mxu0 0.0
        %1035 = vmatprep.subr.mxu0 0.0
        %1036 = vmatpush1.xpose.msra.mxu0 0.0
        %1037 = vmatprep.subr.mxu0 0.0
        %1038 = vmatpush1.xpose.msra.mxu0 0.0
        %1039 = vmatprep.subr.mxu0 0.0
        %1040 = vmatpush1.xpose.msra.mxu0 0.0
        %1041 = vmatprep.subr.mxu0 0.0
        %1042 = vmatpush1.xpose.msra.mxu0 0.0
        %1043 = vmatprep.subr.mxu0 0.0
        %1044 = vmatpush1.xpose.msra.mxu0 0.0
        %1045 = vmatprep.subr.mxu0 0.0
        %1046 = vmatpush1.xpose.msra.mxu0 0.0
        %1047 = vmatprep.subr.mxu0 0.0
        %1048 = vmatpush1.xpose.msra.mxu0 0.0
        %1049 = vmatprep.subr.mxu0 0.0
        %1050 = vmatpush1.xpose.msra.mxu0 0.0
        %1051 = vmatprep.mubr.f32.mxu0 0.0
        %1052 = vmatmul.mubr.f32.gmra.mrb[0].mxu0 %v973
        %v1053 = vpop.f32.mrb[0].mxu0
        %v1054 = vadd.f32 0.0, %v1053
        %v1055 = vpop.f32.mrb[0].mxu0
        %1056 = vdwg.mxu0
        %v1057 = vsel %vm680, %v1054, -inf
        %1058 = vmax.xlane.f32.xlu0 %v1057
        %v1059 = vpop.xlane.xlu0 %1058
        %v1060 = vsub.f32 %v1054, %v1059
        %v1061 = vmul.f32 %v1060, 1.442695
        %v1062 = vpow.pop %v1061
        %v1063 = vsel %vm680, %v1062, 0.0
        %1064 = vadd.xlane.f32.xlu0 %v1063
        %v1065 = vpop.xlane.xlu0 %1064
        %v1066 = vrcp.pop %v1065
        %v1067 = vmul.f32 %v1062, %v1066
        %v1069 = vsel %vm680, %v1067, 0
        %1071 = vmatprep.subr.mxu0 0.0
        %1072 = vmatpush1.msra.mxu0 %v953
        %1073 = vmatprep.subr.mxu0 0.0
        %1074 = vmatpush1.msra.mxu0 %v958
        %1075 = vmatprep.subr.mxu0 0.0
        %1076 = vmatpush1.msra.mxu0 %v963
        %1077 = vmatprep.subr.mxu0 0.0
        %1078 = vmatpush1.msra.mxu0 %v968
        %1079 = vmatprep.subr.mxu0 0.0
        %1080 = vmatpush1.msra.mxu0 0.0
        %1081 = vmatprep.subr.mxu0 0.0
        %1082 = vmatpush1.msra.mxu0 0.0
        %1083 = vmatprep.subr.mxu0 0.0
        %1084 = vmatpush1.msra.mxu0 0.0
        %1085 = vmatprep.subr.mxu0 0.0
        %1086 = vmatpush1.msra.mxu0 0.0
        %1087 = vmatprep.subr.mxu0 0.0
        %1088 = vmatpush1.msra.mxu0 0.0
        %1089 = vmatprep.subr.mxu0 0.0
        %1090 = vmatpush1.msra.mxu0 0.0
        %1091 = vmatprep.subr.mxu0 0.0
        %1092 = vmatpush1.msra.mxu0 0.0
        %1093 = vmatprep.subr.mxu0 0.0
        %1094 = vmatpush1.msra.mxu0 0.0
        %1095 = vmatprep.subr.mxu0 0.0
        %1096 = vmatpush1.msra.mxu0 0.0
        %1097 = vmatprep.subr.mxu0 0.0
        %1098 = vmatpush1.msra.mxu0 0.0
        %1099 = vmatprep.subr.mxu0 0.0
        %1100 = vmatpush1.msra.mxu0 0.0
        %1101 = vmatprep.subr.mxu0 0.0
        %1102 = vmatpush1.msra.mxu0 0.0
        %1103 = vmatprep.subr.mxu0 0.0
        %1104 = vmatpush1.msra.mxu0 0.0
        %1105 = vmatprep.subr.mxu0 0.0
        %1106 = vmatpush1.msra.mxu0 0.0
        %1107 = vmatprep.subr.mxu0 0.0
        %1108 = vmatpush1.msra.mxu0 0.0
        %1109 = vmatprep.subr.mxu0 0.0
        %1110 = vmatpush1.msra.mxu0 0.0
        %1111 = vmatprep.subr.mxu0 0.0
        %1112 = vmatpush1.msra.mxu0 0.0
        %1113 = vmatprep.subr.mxu0 0.0
        %1114 = vmatpush1.msra.mxu0 0.0
        %1115 = vmatprep.subr.mxu0 0.0
        %1116 = vmatpush1.msra.mxu0 0.0
        %1117 = vmatprep.subr.mxu0 0.0
        %1118 = vmatpush1.msra.mxu0 0.0
        %1119 = vmatprep.subr.mxu0 0.0
        %1120 = vmatpush1.msra.mxu0 0.0
        %1121 = vmatprep.subr.mxu0 0.0
        %1122 = vmatpush1.msra.mxu0 0.0
        %1123 = vmatprep.subr.mxu0 0.0
        %1124 = vmatpush1.msra.mxu0 0.0
        %1125 = vmatprep.subr.mxu0 0.0
        %1126 = vmatpush1.msra.mxu0 0.0
        %1127 = vmatprep.subr.mxu0 0.0
        %1128 = vmatpush1.msra.mxu0 0.0
        %1129 = vmatprep.subr.mxu0 0.0
        %1130 = vmatpush1.msra.mxu0 0.0
        %1131 = vmatprep.subr.mxu0 0.0
        %1132 = vmatpush1.msra.mxu0 0.0
        %1133 = vmatprep.subr.mxu0 0.0
        %1134 = vmatpush1.msra.mxu0 0.0
        %1135 = vmatprep.mubr.f32.mxu0 0.0
        %1136 = vmatmul.mubr.f32.gmra.mrb[0].mxu0 %v1069
        %v1137 = vpop.f32.mrb[0].mxu0
        %v1138 = vadd.f32 0.0, %v1137
        %v1139 = vpop.f32.mrb[0].mxu0
        %1140 = vdwg.mxu0
        %1141 = vrot.lane.b32.xlu0 %v754, 120
        %v1142 = vpop.permute.xlu0 %1141
        %1143 = vrot.lane.b32.xlu0 %v845, 120
        %v1144 = vpop.permute.xlu0 %1143
        %1145 = vrot.lane.b32.xlu0 %v850, 120
        %v1146 = vpop.permute.xlu0 %1145
        %1147 = vrot.lane.b32.xlu0 %v855, 120
        %v1148 = vpop.permute.xlu0 %1147
        %1149 = vrot.lane.b32.xlu0 %v860, 120
        %v1150 = vpop.permute.xlu0 %1149
        %v1151 = vsel %vm971, %v1142, 0
        %v1153 = vsel %vm971, %v1144, 0
        %v1155 = vsel %vm971, %v1146, 0
        %v1157 = vsel %vm971, %v1148, 0
        %v1159 = vsel %vm971, %v1150, 0
        %1161 = vmatprep.subr.mxu0 0.0
        %1162 = vmatpush1.xpose.msra.mxu0 %v1153
        %1163 = vmatprep.subr.mxu0 0.0
        %1164 = vmatpush1.xpose.msra.mxu0 %v1155
        %1165 = vmatprep.subr.mxu0 0.0
        %1166 = vmatpush1.xpose.msra.mxu0 %v1157
        %1167 = vmatprep.subr.mxu0 0.0
        %1168 = vmatpush1.xpose.msra.mxu0 %v1159
        %1169 = vmatprep.subr.mxu0 0.0
        %1170 = vmatpush1.xpose.msra.mxu0 0.0
        %1171 = vmatprep.subr.mxu0 0.0
        %1172 = vmatpush1.xpose.msra.mxu0 0.0
        %1173 = vmatprep.subr.mxu0 0.0
        %1174 = vmatpush1.xpose.msra.mxu0 0.0
        %1175 = vmatprep.subr.mxu0 0.0
        %1176 = vmatpush1.xpose.msra.mxu0 0.0
        %1177 = vmatprep.subr.mxu0 0.0
        %1178 = vmatpush1.xpose.msra.mxu0 0.0
        %1179 = vmatprep.subr.mxu0 0.0
        %1180 = vmatpush1.xpose.msra.mxu0 0.0
        %1181 = vmatprep.subr.mxu0 0.0
        %1182 = vmatpush1.xpose.msra.mxu0 0.0
        %1183 = vmatprep.subr.mxu0 0.0
        %1184 = vmatpush1.xpose.msra.mxu0 0.0
        %1185 = vmatprep.subr.mxu0 0.0
        %1186 = vmatpush1.xpose.msra.mxu0 0.0
        %1187 = vmatprep.subr.mxu0 0.0
        %1188 = vmatpush1.xpose.msra.mxu0 0.0
        %1189 = vmatprep.subr.mxu0 0.0
        %1190 = vmatpush1.xpose.msra.mxu0 0.0
        %1191 = vmatprep.subr.mxu0 0.0
        %1192 = vmatpush1.xpose.msra.mxu0 0.0
        %1193 = vmatprep.subr.mxu0 0.0
        %1194 = vmatpush1.xpose.msra.mxu0 0.0
        %1195 = vmatprep.subr.mxu0 0.0
        %1196 = vmatpush1.xpose.msra.mxu0 0.0
        %1197 = vmatprep.subr.mxu0 0.0
        %1198 = vmatpush1.xpose.msra.mxu0 0.0
        %1199 = vmatprep.subr.mxu0 0.0
        %1200 = vmatpush1.xpose.msra.mxu0 0.0
        %1201 = vmatprep.subr.mxu0 0.0
        %1202 = vmatpush1.xpose.msra.mxu0 0.0
        %1203 = vmatprep.subr.mxu0 0.0
        %1204 = vmatpush1.xpose.msra.mxu0 0.0
        %1205 = vmatprep.subr.mxu0 0.0
        %1206 = vmatpush1.xpose.msra.mxu0 0.0
        %1207 = vmatprep.subr.mxu0 0.0
        %1208 = vmatpush1.xpose.msra.mxu0 0.0
        %1209 = vmatprep.subr.mxu0 0.0
        %1210 = vmatpush1.xpose.msra.mxu0 0.0
        %1211 = vmatprep.subr.mxu0 0.0
        %1212 = vmatpush1.xpose.msra.mxu0 0.0
        %1213 = vmatprep.subr.mxu0 0.0
        %1214 = vmatpush1.xpose.msra.mxu0 0.0
        %1215 = vmatprep.subr.mxu0 0.0
        %1216 = vmatpush1.xpose.msra.mxu0 0.0
        %1217 = vmatprep.subr.mxu0 0.0
        %1218 = vmatpush1.xpose.msra.mxu0 0.0
        %1219 = vmatprep.subr.mxu0 0.0
        %1220 = vmatpush1.xpose.msra.mxu0 0.0
        %1221 = vmatprep.subr.mxu0 0.0
        %1222 = vmatpush1.xpose.msra.mxu0 0.0
        %1223 = vmatprep.subr.mxu0 0.0
        %1224 = vmatpush1.xpose.msra.mxu0 0.0
        %1225 = vmatprep.mubr.f32.mxu0 0.0
        %1226 = vmatmul.mubr.f32.gmra.mrb[0].mxu0 %v1151
        %v1227 = vpop.f32.mrb[0].mxu0
        %v1228 = vadd.f32 0.0, %v1227
        %v1229 = vpop.f32.mrb[0].mxu0
        %1230 = vdwg.mxu0
        %v1231 = vsel %vm680, %v1228, -inf
        %1232 = vmax.xlane.f32.xlu0 %v1231
        %v1233 = vpop.xlane.xlu0 %1232
        %v1234 = vsub.f32 %v1228, %v1233
        %v1235 = vmul.f32 %v1234, 1.442695
        %v1236 = vpow.pop %v1235
        %v1237 = vsel %vm680, %v1236, 0.0
        %1238 = vadd.xlane.f32.xlu0 %v1237
        %v1239 = vpop.xlane.xlu0 %1238
        %v1240 = vrcp.pop %v1239
        %v1241 = vmul.f32 %v1236, %v1240
        %1246 = vrot.lane.b32.xlu0 %v953, 120
        %v1247 = vpop.permute.xlu0 %1246
        %1248 = vrot.lane.b32.xlu0 %v958, 120
        %v1249 = vpop.permute.xlu0 %1248
        %1250 = vrot.lane.b32.xlu0 %v963, 120
        %v1251 = vpop.permute.xlu0 %1250
        %1252 = vrot.lane.b32.xlu0 %v968, 120
        %v1253 = vpop.permute.xlu0 %1252
        %v1259 = vsel %vm680, %v1241, 0
        %1261 = vmatprep.subr.mxu0 0.0
        %1262 = vmatpush1.msra.mxu0 %v1247
        %1263 = vmatprep.subr.mxu0 0.0
        %1264 = vmatpush1.msra.mxu0 %v1249
        %1265 = vmatprep.subr.mxu0 0.0
        %1266 = vmatpush1.msra.mxu0 %v1251
        %1267 = vmatprep.subr.mxu0 0.0
        %1268 = vmatpush1.msra.mxu0 %v1253
        %1269 = vmatprep.subr.mxu0 0.0
        %1270 = vmatpush1.msra.mxu0 0.0
        %1271 = vmatprep.subr.mxu0 0.0
        %1272 = vmatpush1.msra.mxu0 0.0
        %1273 = vmatprep.subr.mxu0 0.0
        %1274 = vmatpush1.msra.mxu0 0.0
        %1275 = vmatprep.subr.mxu0 0.0
        %1276 = vmatpush1.msra.mxu0 0.0
        %1277 = vmatprep.subr.mxu0 0.0
        %1278 = vmatpush1.msra.mxu0 0.0
        %1279 = vmatprep.subr.mxu0 0.0
        %1280 = vmatpush1.msra.mxu0 0.0
        %1281 = vmatprep.subr.mxu0 0.0
        %1282 = vmatpush1.msra.mxu0 0.0
        %1283 = vmatprep.subr.mxu0 0.0
        %1284 = vmatpush1.msra.mxu0 0.0
        %1285 = vmatprep.subr.mxu0 0.0
        %1286 = vmatpush1.msra.mxu0 0.0
        %1287 = vmatprep.subr.mxu0 0.0
        %1288 = vmatpush1.msra.mxu0 0.0
        %1289 = vmatprep.subr.mxu0 0.0
        %1290 = vmatpush1.msra.mxu0 0.0
        %1291 = vmatprep.subr.mxu0 0.0
        %1292 = vmatpush1.msra.mxu0 0.0
        %1293 = vmatprep.subr.mxu0 0.0
        %1294 = vmatpush1.msra.mxu0 0.0
        %1295 = vmatprep.subr.mxu0 0.0
        %1296 = vmatpush1.msra.mxu0 0.0
        %1297 = vmatprep.subr.mxu0 0.0
        %1298 = vmatpush1.msra.mxu0 0.0
        %1299 = vmatprep.subr.mxu0 0.0
        %1300 = vmatpush1.msra.mxu0 0.0
        %1301 = vmatprep.subr.mxu0 0.0
        %1302 = vmatpush1.msra.mxu0 0.0
        %1303 = vmatprep.subr.mxu0 0.0
        %1304 = vmatpush1.msra.mxu0 0.0
        %1305 = vmatprep.subr.mxu0 0.0
        %1306 = vmatpush1.msra.mxu0 0.0
        %1307 = vmatprep.subr.mxu0 0.0
        %1308 = vmatpush1.msra.mxu0 0.0
        %1309 = vmatprep.subr.mxu0 0.0
        %1310 = vmatpush1.msra.mxu0 0.0
        %1311 = vmatprep.subr.mxu0 0.0
        %1312 = vmatpush1.msra.mxu0 0.0
        %1313 = vmatprep.subr.mxu0 0.0
        %1314 = vmatpush1.msra.mxu0 0.0
        %1315 = vmatprep.subr.mxu0 0.0
        %1316 = vmatpush1.msra.mxu0 0.0
        %1317 = vmatprep.subr.mxu0 0.0
        %1318 = vmatpush1.msra.mxu0 0.0
        %1319 = vmatprep.subr.mxu0 0.0
        %1320 = vmatpush1.msra.mxu0 0.0
        %1321 = vmatprep.subr.mxu0 0.0
        %1322 = vmatpush1.msra.mxu0 0.0
        %1323 = vmatprep.subr.mxu0 0.0
        %1324 = vmatpush1.msra.mxu0 0.0
        %1325 = vmatprep.mubr.f32.mxu0 0.0
        %1326 = vmatmul.mubr.f32.gmra.mrb[0].mxu0 %v1259
        %v1327 = vpop.f32.mrb[0].mxu0
        %v1328 = vadd.f32 0.0, %v1327
        %v1329 = vpop.f32.mrb[0].mxu0
        %1330 = vdwg.mxu0
        %1331 = vrot.lane.b32.xlu0 %v754, 112
        %v1332 = vpop.permute.xlu0 %1331
        %1333 = vrot.lane.b32.xlu0 %v845, 112
        %v1334 = vpop.permute.xlu0 %1333
        %1335 = vrot.lane.b32.xlu0 %v850, 112
        %v1336 = vpop.permute.xlu0 %1335
        %1337 = vrot.lane.b32.xlu0 %v855, 112
        %v1338 = vpop.permute.xlu0 %1337
        %1339 = vrot.lane.b32.xlu0 %v860, 112
        %v1340 = vpop.permute.xlu0 %1339
        %v1341 = vsel %vm971, %v1332, 0
        %v1343 = vsel %vm971, %v1334, 0
        %v1345 = vsel %vm971, %v1336, 0
        %v1347 = vsel %vm971, %v1338, 0
        %v1349 = vsel %vm971, %v1340, 0
        %1351 = vmatprep.subr.mxu0 0.0
        %1352 = vmatpush1.xpose.msra.mxu0 %v1343
        %1353 = vmatprep.subr.mxu0 0.0
        %1354 = vmatpush1.xpose.msra.mxu0 %v1345
        %1355 = vmatprep.subr.mxu0 0.0
        %1356 = vmatpush1.xpose.msra.mxu0 %v1347
        %1357 = vmatprep.subr.mxu0 0.0
        %1358 = vmatpush1.xpose.msra.mxu0 %v1349
        %1359 = vmatprep.subr.mxu0 0.0
        %1360 = vmatpush1.xpose.msra.mxu0 0.0
        %1361 = vmatprep.subr.mxu0 0.0
        %1362 = vmatpush1.xpose.msra.mxu0 0.0
        %1363 = vmatprep.subr.mxu0 0.0
        %1364 = vmatpush1.xpose.msra.mxu0 0.0
        %1365 = vmatprep.subr.mxu0 0.0
        %1366 = vmatpush1.xpose.msra.mxu0 0.0
        %1367 = vmatprep.subr.mxu0 0.0
        %1368 = vmatpush1.xpose.msra.mxu0 0.0
        %1369 = vmatprep.subr.mxu0 0.0
        %1370 = vmatpush1.xpose.msra.mxu0 0.0
        %1371 = vmatprep.subr.mxu0 0.0
        %1372 = vmatpush1.xpose.msra.mxu0 0.0
        %1373 = vmatprep.subr.mxu0 0.0
        %1374 = vmatpush1.xpose.msra.mxu0 0.0
        %1375 = vmatprep.subr.mxu0 0.0
        %1376 = vmatpush1.xpose.msra.mxu0 0.0
        %1377 = vmatprep.subr.mxu0 0.0
        %1378 = vmatpush1.xpose.msra.mxu0 0.0
        %1379 = vmatprep.subr.mxu0 0.0
        %1380 = vmatpush1.xpose.msra.mxu0 0.0
        %1381 = vmatprep.subr.mxu0 0.0
        %1382 = vmatpush1.xpose.msra.mxu0 0.0
        %1383 = vmatprep.subr.mxu0 0.0
        %1384 = vmatpush1.xpose.msra.mxu0 0.0
        %1385 = vmatprep.subr.mxu0 0.0
        %1386 = vmatpush1.xpose.msra.mxu0 0.0
        %1387 = vmatprep.subr.mxu0 0.0
        %1388 = vmatpush1.xpose.msra.mxu0 0.0
        %1389 = vmatprep.subr.mxu0 0.0
        %1390 = vmatpush1.xpose.msra.mxu0 0.0
        %1391 = vmatprep.subr.mxu0 0.0
        %1392 = vmatpush1.xpose.msra.mxu0 0.0
        %1393 = vmatprep.subr.mxu0 0.0
        %1394 = vmatpush1.xpose.msra.mxu0 0.0
        %1395 = vmatprep.subr.mxu0 0.0
        %1396 = vmatpush1.xpose.msra.mxu0 0.0
        %1397 = vmatprep.subr.mxu0 0.0
        %1398 = vmatpush1.xpose.msra.mxu0 0.0
        %1399 = vmatprep.subr.mxu0 0.0
        %1400 = vmatpush1.xpose.msra.mxu0 0.0
        %1401 = vmatprep.subr.mxu0 0.0
        %1402 = vmatpush1.xpose.msra.mxu0 0.0
        %1403 = vmatprep.subr.mxu0 0.0
        %1404 = vmatpush1.xpose.msra.mxu0 0.0
        %1405 = vmatprep.subr.mxu0 0.0
        %1406 = vmatpush1.xpose.msra.mxu0 0.0
        %1407 = vmatprep.subr.mxu0 0.0
        %1408 = vmatpush1.xpose.msra.mxu0 0.0
        %1409 = vmatprep.subr.mxu0 0.0
        %1410 = vmatpush1.xpose.msra.mxu0 0.0
        %1411 = vmatprep.subr.mxu0 0.0
        %1412 = vmatpush1.xpose.msra.mxu0 0.0
        %1413 = vmatprep.subr.mxu0 0.0
        %1414 = vmatpush1.xpose.msra.mxu0 0.0
        %1415 = vmatprep.mubr.f32.mxu0 0.0
        %1416 = vmatmul.mubr.f32.gmra.mrb[0].mxu0 %v1341
        %v1417 = vpop.f32.mrb[0].mxu0
        %v1418 = vadd.f32 0.0, %v1417
        %v1419 = vpop.f32.mrb[0].mxu0
        %1420 = vdwg.mxu0
        %v1421 = vsel %vm680, %v1418, -inf
        %1422 = vmax.xlane.f32.xlu0 %v1421
        %v1423 = vpop.xlane.xlu0 %1422
        %v1424 = vsub.f32 %v1418, %v1423
        %v1425 = vmul.f32 %v1424, 1.442695
        %v1426 = vpow.pop %v1425
        %v1427 = vsel %vm680, %v1426, 0.0
        %1428 = vadd.xlane.f32.xlu0 %v1427
        %v1429 = vpop.xlane.xlu0 %1428
        %v1430 = vrcp.pop %v1429
        %v1431 = vmul.f32 %v1426, %v1430
        %1432 = vrot.lane.b32.xlu0 %v953, 112
        %v1433 = vpop.permute.xlu0 %1432
        %1434 = vrot.lane.b32.xlu0 %v958, 112
        %v1435 = vpop.permute.xlu0 %1434
        %1436 = vrot.lane.b32.xlu0 %v963, 112
        %v1437 = vpop.permute.xlu0 %1436
        %1438 = vrot.lane.b32.xlu0 %v968, 112
        %v1439 = vpop.permute.xlu0 %1438
        %v1445 = vsel %vm680, %v1431, 0
        %1447 = vmatprep.subr.mxu0 0.0
        %1448 = vmatpush1.msra.mxu0 %v1433
        %1449 = vmatprep.subr.mxu0 0.0
        %1450 = vmatpush1.msra.mxu0 %v1435
        %1451 = vmatprep.subr.mxu0 0.0
        %1452 = vmatpush1.msra.mxu0 %v1437
        %1453 = vmatprep.subr.mxu0 0.0
        %1454 = vmatpush1.msra.mxu0 %v1439
        %1455 = vmatprep.subr.mxu0 0.0
        %1456 = vmatpush1.msra.mxu0 0.0
        %1457 = vmatprep.subr.mxu0 0.0
        %1458 = vmatpush1.msra.mxu0 0.0
        %1459 = vmatprep.subr.mxu0 0.0
        %1460 = vmatpush1.msra.mxu0 0.0
        %1461 = vmatprep.subr.mxu0 0.0
        %1462 = vmatpush1.msra.mxu0 0.0
        %1463 = vmatprep.subr.mxu0 0.0
        %1464 = vmatpush1.msra.mxu0 0.0
        %1465 = vmatprep.subr.mxu0 0.0
        %1466 = vmatpush1.msra.mxu0 0.0
        %1467 = vmatprep.subr.mxu0 0.0
        %1468 = vmatpush1.msra.mxu0 0.0
        %1469 = vmatprep.subr.mxu0 0.0
        %1470 = vmatpush1.msra.mxu0 0.0
        %1471 = vmatprep.subr.mxu0 0.0
        %1472 = vmatpush1.msra.mxu0 0.0
        %1473 = vmatprep.subr.mxu0 0.0
        %1474 = vmatpush1.msra.mxu0 0.0
        %1475 = vmatprep.subr.mxu0 0.0
        %1476 = vmatpush1.msra.mxu0 0.0
        %1477 = vmatprep.subr.mxu0 0.0
        %1478 = vmatpush1.msra.mxu0 0.0
        %1479 = vmatprep.subr.mxu0 0.0
        %1480 = vmatpush1.msra.mxu0 0.0
        %1481 = vmatprep.subr.mxu0 0.0
        %1482 = vmatpush1.msra.mxu0 0.0
        %1483 = vmatprep.subr.mxu0 0.0
        %1484 = vmatpush1.msra.mxu0 0.0
        %1485 = vmatprep.subr.mxu0 0.0
        %1486 = vmatpush1.msra.mxu0 0.0
        %1487 = vmatprep.subr.mxu0 0.0
        %1488 = vmatpush1.msra.mxu0 0.0
        %1489 = vmatprep.subr.mxu0 0.0
        %1490 = vmatpush1.msra.mxu0 0.0
        %1491 = vmatprep.subr.mxu0 0.0
        %1492 = vmatpush1.msra.mxu0 0.0
        %1493 = vmatprep.subr.mxu0 0.0
        %1494 = vmatpush1.msra.mxu0 0.0
        %1495 = vmatprep.subr.mxu0 0.0
        %1496 = vmatpush1.msra.mxu0 0.0
        %1497 = vmatprep.subr.mxu0 0.0
        %1498 = vmatpush1.msra.mxu0 0.0
        %1499 = vmatprep.subr.mxu0 0.0
        %1500 = vmatpush1.msra.mxu0 0.0
        %1501 = vmatprep.subr.mxu0 0.0
        %1502 = vmatpush1.msra.mxu0 0.0
        %1503 = vmatprep.subr.mxu0 0.0
        %1504 = vmatpush1.msra.mxu0 0.0
        %1505 = vmatprep.subr.mxu0 0.0
        %1506 = vmatpush1.msra.mxu0 0.0
        %1507 = vmatprep.subr.mxu0 0.0
        %1508 = vmatpush1.msra.mxu0 0.0
        %1509 = vmatprep.subr.mxu0 0.0
        %1510 = vmatpush1.msra.mxu0 0.0
        %1511 = vmatprep.mubr.f32.mxu0 0.0
        %1512 = vmatmul.mubr.f32.gmra.mrb[0].mxu0 %v1445
        %v1513 = vpop.f32.mrb[0].mxu0
        %v1514 = vadd.f32 0.0, %v1513
        %v1515 = vpop.f32.mrb[0].mxu0
        %1516 = vdwg.mxu0
        %1517 = vrot.lane.b32.xlu0 %v754, 104
        %v1518 = vpop.permute.xlu0 %1517
        %1519 = vrot.lane.b32.xlu0 %v845, 104
        %v1520 = vpop.permute.xlu0 %1519
        %1521 = vrot.lane.b32.xlu0 %v850, 104
        %v1522 = vpop.permute.xlu0 %1521
        %1523 = vrot.lane.b32.xlu0 %v855, 104
        %v1524 = vpop.permute.xlu0 %1523
        %1525 = vrot.lane.b32.xlu0 %v860, 104
        %v1526 = vpop.permute.xlu0 %1525
        %v1527 = vsel %vm971, %v1518, 0
        %v1529 = vsel %vm971, %v1520, 0
        %v1531 = vsel %vm971, %v1522, 0
        %v1533 = vsel %vm971, %v1524, 0
        %v1535 = vsel %vm971, %v1526, 0
        %1537 = vmatprep.subr.mxu0 0.0
        %1538 = vmatpush1.xpose.msra.mxu0 %v1529
        %1539 = vmatprep.subr.mxu0 0.0
        %1540 = vmatpush1.xpose.msra.mxu0 %v1531
        %1541 = vmatprep.subr.mxu0 0.0
        %1542 = vmatpush1.xpose.msra.mxu0 %v1533
        %1543 = vmatprep.subr.mxu0 0.0
        %1544 = vmatpush1.xpose.msra.mxu0 %v1535
        %1545 = vmatprep.subr.mxu0 0.0
        %1546 = vmatpush1.xpose.msra.mxu0 0.0
        %1547 = vmatprep.subr.mxu0 0.0
        %1548 = vmatpush1.xpose.msra.mxu0 0.0
        %1549 = vmatprep.subr.mxu0 0.0
        %1550 = vmatpush1.xpose.msra.mxu0 0.0
        %1551 = vmatprep.subr.mxu0 0.0
        %1552 = vmatpush1.xpose.msra.mxu0 0.0
        %1553 = vmatprep.subr.mxu0 0.0
        %1554 = vmatpush1.xpose.msra.mxu0 0.0
        %1555 = vmatprep.subr.mxu0 0.0
        %1556 = vmatpush1.xpose.msra.mxu0 0.0
        %1557 = vmatprep.subr.mxu0 0.0
        %1558 = vmatpush1.xpose.msra.mxu0 0.0
        %1559 = vmatprep.subr.mxu0 0.0
        %1560 = vmatpush1.xpose.msra.mxu0 0.0
        %1561 = vmatprep.subr.mxu0 0.0
        %1562 = vmatpush1.xpose.msra.mxu0 0.0
        %1563 = vmatprep.subr.mxu0 0.0
        %1564 = vmatpush1.xpose.msra.mxu0 0.0
        %1565 = vmatprep.subr.mxu0 0.0
        %1566 = vmatpush1.xpose.msra.mxu0 0.0
        %1567 = vmatprep.subr.mxu0 0.0
        %1568 = vmatpush1.xpose.msra.mxu0 0.0
        %1569 = vmatprep.subr.mxu0 0.0
        %1570 = vmatpush1.xpose.msra.mxu0 0.0
        %1571 = vmatprep.subr.mxu0 0.0
        %1572 = vmatpush1.xpose.msra.mxu0 0.0
        %1573 = vmatprep.subr.mxu0 0.0
        %1574 = vmatpush1.xpose.msra.mxu0 0.0
        %1575 = vmatprep.subr.mxu0 0.0
        %1576 = vmatpush1.xpose.msra.mxu0 0.0
        %1577 = vmatprep.subr.mxu0 0.0
        %1578 = vmatpush1.xpose.msra.mxu0 0.0
        %1579 = vmatprep.subr.mxu0 0.0
        %1580 = vmatpush1.xpose.msra.mxu0 0.0
        %1581 = vmatprep.subr.mxu0 0.0
        %1582 = vmatpush1.xpose.msra.mxu0 0.0
        %1583 = vmatprep.subr.mxu0 0.0
        %1584 = vmatpush1.xpose.msra.mxu0 0.0
        %1585 = vmatprep.subr.mxu0 0.0
        %1586 = vmatpush1.xpose.msra.mxu0 0.0
        %1587 = vmatprep.subr.mxu0 0.0
        %1588 = vmatpush1.xpose.msra.mxu0 0.0
        %1589 = vmatprep.subr.mxu0 0.0
        %1590 = vmatpush1.xpose.msra.mxu0 0.0
        %1591 = vmatprep.subr.mxu0 0.0
        %1592 = vmatpush1.xpose.msra.mxu0 0.0
        %1593 = vmatprep.subr.mxu0 0.0
        %1594 = vmatpush1.xpose.msra.mxu0 0.0
        %1595 = vmatprep.subr.mxu0 0.0
        %1596 = vmatpush1.xpose.msra.mxu0 0.0
        %1597 = vmatprep.subr.mxu0 0.0
        %1598 = vmatpush1.xpose.msra.mxu0 0.0
        %1599 = vmatprep.subr.mxu0 0.0
        %1600 = vmatpush1.xpose.msra.mxu0 0.0
        %1601 = vmatprep.mubr.f32.mxu0 0.0
        %1602 = vmatmul.mubr.f32.gmra.mrb[0].mxu0 %v1527
        %v1603 = vpop.f32.mrb[0].mxu0
        %v1604 = vadd.f32 0.0, %v1603
        %v1605 = vpop.f32.mrb[0].mxu0
        %1606 = vdwg.mxu0
        %v1607 = vsel %vm680, %v1604, -inf
        %1608 = vmax.xlane.f32.xlu0 %v1607
        %v1609 = vpop.xlane.xlu0 %1608
        %v1610 = vsub.f32 %v1604, %v1609
        %v1611 = vmul.f32 %v1610, 1.442695
        %v1612 = vpow.pop %v1611
        %v1613 = vsel %vm680, %v1612, 0.0
        %1614 = vadd.xlane.f32.xlu0 %v1613
        %v1615 = vpop.xlane.xlu0 %1614
        %v1616 = vrcp.pop %v1615
        %v1617 = vmul.f32 %v1612, %v1616
        %1618 = vrot.lane.b32.xlu0 %v953, 104
        %v1619 = vpop.permute.xlu0 %1618
        %1620 = vrot.lane.b32.xlu0 %v958, 104
        %v1621 = vpop.permute.xlu0 %1620
        %1622 = vrot.lane.b32.xlu0 %v963, 104
        %v1623 = vpop.permute.xlu0 %1622
        %1624 = vrot.lane.b32.xlu0 %v968, 104
        %v1625 = vpop.permute.xlu0 %1624
        %v1631 = vsel %vm680, %v1617, 0
        %1633 = vmatprep.subr.mxu0 0.0
        %1634 = vmatpush1.msra.mxu0 %v1619
        %1635 = vmatprep.subr.mxu0 0.0
        %1636 = vmatpush1.msra.mxu0 %v1621
        %1637 = vmatprep.subr.mxu0 0.0
        %1638 = vmatpush1.msra.mxu0 %v1623
        %1639 = vmatprep.subr.mxu0 0.0
        %1640 = vmatpush1.msra.mxu0 %v1625
        %1641 = vmatprep.subr.mxu0 0.0
        %1642 = vmatpush1.msra.mxu0 0.0
        %1643 = vmatprep.subr.mxu0 0.0
        %1644 = vmatpush1.msra.mxu0 0.0
        %1645 = vmatprep.subr.mxu0 0.0
        %1646 = vmatpush1.msra.mxu0 0.0
        %1647 = vmatprep.subr.mxu0 0.0
        %1648 = vmatpush1.msra.mxu0 0.0
        %1649 = vmatprep.subr.mxu0 0.0
        %1650 = vmatpush1.msra.mxu0 0.0
        %1651 = vmatprep.subr.mxu0 0.0
        %1652 = vmatpush1.msra.mxu0 0.0
        %1653 = vmatprep.subr.mxu0 0.0
        %1654 = vmatpush1.msra.mxu0 0.0
        %1655 = vmatprep.subr.mxu0 0.0
        %1656 = vmatpush1.msra.mxu0 0.0
        %1657 = vmatprep.subr.mxu0 0.0
        %1658 = vmatpush1.msra.mxu0 0.0
        %1659 = vmatprep.subr.mxu0 0.0
        %1660 = vmatpush1.msra.mxu0 0.0
        %1661 = vmatprep.subr.mxu0 0.0
        %1662 = vmatpush1.msra.mxu0 0.0
        %1663 = vmatprep.subr.mxu0 0.0
        %1664 = vmatpush1.msra.mxu0 0.0
        %1665 = vmatprep.subr.mxu0 0.0
        %1666 = vmatpush1.msra.mxu0 0.0
        %1667 = vmatprep.subr.mxu0 0.0
        %1668 = vmatpush1.msra.mxu0 0.0
        %1669 = vmatprep.subr.mxu0 0.0
        %1670 = vmatpush1.msra.mxu0 0.0
        %1671 = vmatprep.subr.mxu0 0.0
        %1672 = vmatpush1.msra.mxu0 0.0
        %1673 = vmatprep.subr.mxu0 0.0
        %1674 = vmatpush1.msra.mxu0 0.0
        %1675 = vmatprep.subr.mxu0 0.0
        %1676 = vmatpush1.msra.mxu0 0.0
        %1677 = vmatprep.subr.mxu0 0.0
        %1678 = vmatpush1.msra.mxu0 0.0
        %1679 = vmatprep.subr.mxu0 0.0
        %1680 = vmatpush1.msra.mxu0 0.0
        %1681 = vmatprep.subr.mxu0 0.0
        %1682 = vmatpush1.msra.mxu0 0.0
        %1683 = vmatprep.subr.mxu0 0.0
        %1684 = vmatpush1.msra.mxu0 0.0
        %1685 = vmatprep.subr.mxu0 0.0
        %1686 = vmatpush1.msra.mxu0 0.0
        %1687 = vmatprep.subr.mxu0 0.0
        %1688 = vmatpush1.msra.mxu0 0.0
        %1689 = vmatprep.subr.mxu0 0.0
        %1690 = vmatpush1.msra.mxu0 0.0
        %1691 = vmatprep.subr.mxu0 0.0
        %1692 = vmatpush1.msra.mxu0 0.0
        %1693 = vmatprep.subr.mxu0 0.0
        %1694 = vmatpush1.msra.mxu0 0.0
        %1695 = vmatprep.subr.mxu0 0.0
        %1696 = vmatpush1.msra.mxu0 0.0
        %1697 = vmatprep.mubr.f32.mxu0 0.0
        %1698 = vmatmul.mubr.f32.gmra.mrb[0].mxu0 %v1631
        %v1699 = vpop.f32.mrb[0].mxu0
        %v1700 = vadd.f32 0.0, %v1699
        %v1701 = vpop.f32.mrb[0].mxu0
        %1702 = vdwg.mxu0
        %1704 = vrot.lane.b32.xlu0 %v1328, 8
        %v1705 = vpop.permute.xlu0 %1704
        %1708 = vrot.lane.b32.xlu0 %v1514, 16
        %v1709 = vpop.permute.xlu0 %1708
        %1712 = vrot.lane.b32.xlu0 %v1700, 24
        %v1713 = vpop.permute.xlu0 %1712
        %v1715 = vsel %vm971, %v1138, %v1705
        %vm1716 = vcmask 130048
        %v1717 = vsel %vm1716, %v1715, %v1709
        %vm1718 = vcmask 195584
        %v1719 = vsel %vm1718, %v1717, %v1713
        %v1720 = vld [vmem:[%s10] sm:$0xff]
        %v1721 = vld [vmem:[%s10 + $0x8] sm:$0xff]
        %v1722 = vld [vmem:[%s10 + $0x10] sm:$0xff]
        %v1723 = vld [vmem:[%s10 + $0x18] sm:$0xff]
        %v1724 = vld [vmem:[%s11] sm:$0x1]
        %v1726 = vlaneseq
        %v1727 = vshrl.u32 %v1726, 7
        %v1728 = vsub.s32 0, %v1727
        %v1729 = vrot.slane %v1724, %v1728
        %v1732 = vsel %vm680, %v1719, 0
        %1734 = vmatprep.subr.mxu0 0.0
        %1735 = vmatpush1.msra.mxu0 %v1720
        %1736 = vmatprep.subr.mxu0 0.0
        %1737 = vmatpush1.msra.mxu0 %v1721
        %1738 = vmatprep.subr.mxu0 0.0
        %1739 = vmatpush1.msra.mxu0 %v1722
        %1740 = vmatprep.subr.mxu0 0.0
        %1741 = vmatpush1.msra.mxu0 %v1723
        %1742 = vmatprep.subr.mxu0 0.0
        %1743 = vmatpush1.msra.mxu0 0.0
        %1744 = vmatprep.subr.mxu0 0.0
        %1745 = vmatpush1.msra.mxu0 0.0
        %1746 = vmatprep.subr.mxu0 0.0
        %1747 = vmatpush1.msra.mxu0 0.0
        %1748 = vmatprep.subr.mxu0 0.0
        %1749 = vmatpush1.msra.mxu0 0.0
        %1750 = vmatprep.subr.mxu0 0.0
        %1751 = vmatpush1.msra.mxu0 0.0
        %1752 = vmatprep.subr.mxu0 0.0
        %1753 = vmatpush1.msra.mxu0 0.0
        %1754 = vmatprep.subr.mxu0 0.0
        %1755 = vmatpush1.msra.mxu0 0.0
        %1756 = vmatprep.subr.mxu0 0.0
        %1757 = vmatpush1.msra.mxu0 0.0
        %1758 = vmatprep.subr.mxu0 0.0
        %1759 = vmatpush1.msra.mxu0 0.0
        %1760 = vmatprep.subr.mxu0 0.0
        %1761 = vmatpush1.msra.mxu0 0.0
        %1762 = vmatprep.subr.mxu0 0.0
        %1763 = vmatpush1.msra.mxu0 0.0
        %1764 = vmatprep.subr.mxu0 0.0
        %1765 = vmatpush1.msra.mxu0 0.0
        %1766 = vmatprep.subr.mxu0 0.0
        %1767 = vmatpush1.msra.mxu0 0.0
        %1768 = vmatprep.subr.mxu0 0.0
        %1769 = vmatpush1.msra.mxu0 0.0
        %1770 = vmatprep.subr.mxu0 0.0
        %1771 = vmatpush1.msra.mxu0 0.0
        %1772 = vmatprep.subr.mxu0 0.0
        %1773 = vmatpush1.msra.mxu0 0.0
        %1774 = vmatprep.subr.mxu0 0.0
        %1775 = vmatpush1.msra.mxu0 0.0
        %1776 = vmatprep.subr.mxu0 0.0
        %1777 = vmatpush1.msra.mxu0 0.0
        %1778 = vmatprep.subr.mxu0 0.0
        %1779 = vmatpush1.msra.mxu0 0.0
        %1780 = vmatprep.subr.mxu0 0.0
        %1781 = vmatpush1.msra.mxu0 0.0
        %1782 = vmatprep.subr.mxu0 0.0
        %1783 = vmatpush1.msra.mxu0 0.0
        %1784 = vmatprep.subr.mxu0 0.0
        %1785 = vmatpush1.msra.mxu0 0.0
        %1786 = vmatprep.subr.mxu0 0.0
        %1787 = vmatpush1.msra.mxu0 0.0
        %1788 = vmatprep.subr.mxu0 0.0
        %1789 = vmatpush1.msra.mxu0 0.0
        %1790 = vmatprep.subr.mxu0 0.0
        %1791 = vmatpush1.msra.mxu0 0.0
        %1792 = vmatprep.subr.mxu0 0.0
        %1793 = vmatpush1.msra.mxu0 0.0
        %1794 = vmatprep.subr.mxu0 0.0
        %1795 = vmatpush1.msra.mxu0 0.0
        %1796 = vmatprep.subr.mxu0 0.0
        %1797 = vmatpush1.msra.mxu0 0.0
        %1798 = vmatprep.mubr.f32.mxu0 0.0
        %1799 = vmatmul.mubr.f32.gmra.mrb[0].mxu0 %v1732
        %v1800 = vpop.f32.mrb[0].mxu0
        %v1801 = vadd.f32 %v1729, %v1800
        %v1802 = vpop.f32.mrb[0].mxu0
        %1803 = vdwg.mxu0
        %v1804 = vld [vmem:[%s561] sm:$0xff]
        %v1805 = vadd.f32 %v1804, %v1801
        %v1806 = vsel %vm680, %v1805, 0.0
        %1807 = vadd.xlane.f32.xlu0 %v1806
        %v1808 = vpop.xlane.xlu0 %1807
        %v1809 = vrcp.pop 32.0
        %v1810 = vmul.f32 %v1808, %v1809
        %v1811 = vsub.f32 %v1805, %v1810
        %v1812 = vmul.f32 %v1811, %v1811
        %v1813 = vsel %vm680, %v1812, 0.0
        %1814 = vadd.xlane.f32.xlu0 %v1813
        %v1815 = vpop.xlane.xlu0 %1814
        %v1816 = vmul.f32 %v1815, %v1809
        %v1817 = vadd.f32 %v1816, 1e-05
        %v1818 = vrsqrt.pop %v1817
        %v1819 = vmul.f32 %v1811, %v1818
        %v1820 = vld [vmem:[%s12] sm:$0x1]
        %v1822 = vlaneseq
        %v1823 = vshrl.u32 %v1822, 7
        %v1824 = vsub.s32 0, %v1823
        %v1825 = vrot.slane %v1820, %v1824
        %v1827 = vmul.f32 %v1819, %v1825
        %v1828 = vld [vmem:[%s13] sm:$0x1]
        %v1830 = vlaneseq
        %v1831 = vshrl.u32 %v1830, 7
        %v1832 = vsub.s32 0, %v1831
        %v1833 = vrot.slane %v1828, %v1832
        %v1835 = vadd.f32 %v1827, %v1833
        %1836 = vst.msk [vmem:[%s659] sm:$0xff] %vm680, %v1835
        %s1837 = sand.u32 %s378, 1
        %s1838 = scalar_lea.sflag [#allocation4], %s1837
        %s1839 = sand.u32 %s378, 1
        %s1840 = smul.addr %s1839, 8
        %s1841 = scalar_lea.vmem [#allocation14], %s1840
        // Predicated region
        $region105: #{tpu_custom_call.1} parent=75 // pred_check
          %p1842 = pneg %p388
        $region106: #{tpu_custom_call.1} parent=75 // pred_check_branch
          %1844 = sbr.rel (%p1842) target = $region108
        $region107: #{tpu_custom_call.1} parent=75 // pred_region
          %s1846 = ssub.s32 128, 128
          %1847 = vsyncadd %s1838, %s1846
          %s1848 = sadd.s32 %s43, %s42
          %s1849 = smul.addr %s1848, 128
          %s1850 = scalar_lea.hbm %s14, %s1849
          %s1852 = sshll.u32 %s1841, 4
          %s1853 = int_to_ptr.vmem [resolvable:$true] %s1852
          %1855 = dma.vmem_to_hbm [thread:$0]  %s1853, 128, %s1850, %s1838
        $region108: #{tpu_custom_call.1} parent=75 // pred_fallthru
          _
      $region76: #{tpu_custom_call.1} parent=5 // pred_fallthru
        _
      %p1856 = scmp.le.s32.totalorder 2, %s33
      // Predicated region
      $region109: #{tpu_custom_call.1} parent=5 // pred_check
        %p1857 = pneg %p1856
      $region110: #{tpu_custom_call.1} parent=5 // pred_check_branch
        %1859 = sbr.rel (%p1857) target = $region112
      $region111: #{tpu_custom_call.1} parent=5 // pred_region
        %s1860 = ssub.s32 %s33, 2
        // Predicated region
        $region113: #{tpu_custom_call.1} parent=111 // pred_check
          %p1861 = pneg %p394
        $region114: #{tpu_custom_call.1} parent=111 // pred_check_branch
          %1863 = sbr.rel (%p1861) target = $region116
        $region115: #{tpu_custom_call.1} parent=111 // pred_region
          %s1864 = sand.u32 %s379, 1
          %s1865 = scalar_lea.sflag [#allocation4], %s1864
          %s1866 = sand.u32 %s379, 1
          %s1867 = smul.addr %s1866, 8
          %s1868 = scalar_lea.vmem [#allocation14], %s1867
          %1869 = dma.done %s1865, 128
        $region116: #{tpu_custom_call.1} parent=111 // pred_fallthru
          _
      $region112: #{tpu_custom_call.1} parent=5 // pred_fallthru
        _
    $region6: #{tpu_custom_call.1} parent=1 // loop_footer
      %s37 = sadd.s32 1, %s33
    $region7: #{tpu_custom_call.1} parent=1 // loop_footer_branch
      %32 = sbr.rel target = $region3
    $region8: #{tpu_custom_call.1} parent=1 // loop_exit
      _
    %1870 = vsyncpa [#allocation3], 1
    %s1871 = scalar_lea.sflag [#allocation3], 1
    %1872 = vsyncpa %s1871, 1
    %1873 = vsyncpa [#allocation6], 1
    %s1874 = scalar_lea.sflag [#allocation6], 1
    %1875 = vsyncpa %s1874, 1
    %1876 = vsyncpa [#allocation9], 1
    %s1877 = scalar_lea.sflag [#allocation9], 1
    %1878 = vsyncpa %s1877, 1
    %1879 = vsyncpa [#allocation12], 1
    %1880 = vsyncpa [#allocation4], 1
    %s1881 = scalar_lea.sflag [#allocation4], 1
    %1882 = vsyncpa %s1881, 1

</llo_original>
